<compile_context>
chip_gen: v7x
topology: tpu7x:2x2x1
jax: 0.10.0
libtpu: 0.0.40
codegen_flags: <defaults>
</compile_context>

<pallas_src>
import math

import numpy as np
import jax
import jax.numpy as jnp
from jax.experimental import pallas as pl
from jax.experimental.pallas import tpu as pltpu

# ---- model hyper-parameters (ModelConfig) -----------------------------------
BATCH = 2
SEQ = 16
D_MODEL = 64
N_HEADS = 4
D_HEAD = D_MODEL // N_HEADS          # 16
FF_MULT = 4
D_FF = D_MODEL * FF_MULT             # 256
LN_EPS = 1e-5                        # torch.nn.LayerNorm default
BS = BATCH * SEQ                     # folded batch*seq rows = 32
LOG2_BS = BS.bit_length() - 1        # 5
LOG2_DH = D_HEAD.bit_length() - 1    # 4
# drop_p exists in the torch module but forward() never applies dropout (SDPA dropout_p=0),
# so there is no dropout in this kernel.

# tables slab column offsets (f32, shape (BS, 448))
T_CS, T_SN, T_BIAS, T_LN, T_END = 0, 128, 256, 384, 448
# weight slab column offsets (bf16, shape (64, 960))
W_QKV, W_QKV_END = 0, 320            # [Wq*scale | Wk | Wqc | Wkc | Wv]
W_GU, W_GU_END = 384, 896            # [Wg | Wu]   (128-lane aligned)
W_O, W_O_END = 896, 960              # Wo          (128-lane aligned)


# ---- Pallas kernel -----------------------------------------------------------
def fused_block_kernel(x_ref, tab_ref, w64_ref, wd_ref, o_ref):
    x = x_ref[...]                                   # (BS, D) f32, batch folded into rows

    cs = tab_ref[:, T_CS:T_SN]                       # (BS, 128) cos table for packed [q|k]
    sn = tab_ref[:, T_SN:T_BIAS]                     # (BS, 128) sin table
    bias = tab_ref[:, T_BIAS:T_LN]                   # (BS, 128) block-diag causal, per head
    g1 = tab_ref[0:1, T_LN:T_END]                    # (1, 64) LN params
    b1 = tab_ref[1:2, T_LN:T_END]
    g2 = tab_ref[2:3, T_LN:T_END]
    b2 = tab_ref[3:4, T_LN:T_END]

    def layer_norm(h, g, b):
        # two-moment form: the two XLU reductions are independent (better ILP)
        mu = jnp.mean(h, axis=-1, keepdims=True)
        ms = jnp.mean(h * h, axis=-1, keepdims=True)
        var = ms - mu * mu
        return (h - mu) * jax.lax.rsqrt(var + LN_EPS) * g + b

    # ---- attention sub-block -------------------------------------------------
    h1b = layer_norm(x, g1, b1).astype(jnp.bfloat16)

    # one packed projection: [q | k | qc | kc | v]  (1/sqrt(d_head) folded into q/qc)
    r = jnp.dot(h1b, w64_ref[:, W_QKV:W_QKV_END],
                preferred_element_type=jnp.float32)                   # (BS, 320)

    # full-width RoPE on the lane-aligned [q|k] slab: whole-vreg VPU FMAs only
    qk_rot = r[:, 0:128] * cs + r[:, 128:256] * sn                    # (BS, 128) f32
    qb = qk_rot[:, 0:D_MODEL].astype(jnp.bfloat16)                    # (BS, 64)
    k_rot = qk_rot[:, D_MODEL:2 * D_MODEL]                            # (BS, 64) f32
    v_f = r[:, 256:320]                                               # (BS, 64) f32

    # block-diagonal head batching: blk[row, col] = (row // BS == col // D_HEAD)
    rid = jax.lax.broadcasted_iota(jnp.int32, (N_HEADS * BS, D_MODEL), 0)
    cid = jax.lax.broadcasted_iota(jnp.int32, (N_HEADS * BS, D_MODEL), 1)
    blk = (rid >> LOG2_BS) == (cid >> LOG2_DH)                        # (128, 64) bool
    krep = jnp.concatenate([k_rot] * N_HEADS, axis=0)                 # (128, 64) f32
    vrep = jnp.concatenate([v_f] * N_HEADS, axis=0)
    zf = jnp.zeros_like(krep)
    k_bd = jnp.where(blk, krep, zf).astype(jnp.bfloat16)              # block-diag K
    v_bd = jnp.where(blk, vrep, zf).astype(jnp.bfloat16)              # block-diag V
    ones_bd = jnp.where(blk, 1.0, 0.0).astype(jnp.bfloat16)           # block indicator

    # all heads in a single lane-dense matmul pair
    s = jax.lax.dot_general(qb, k_bd, (((1,), (1,)), ((), ())),
                            preferred_element_type=jnp.float32)       # (BS, 128)
    s = s + bias                                                      # causal + batch mask
    m = jnp.max(s, axis=-1, keepdims=True)                            # 1 global row max
    p = jnp.exp(s - m).astype(jnp.bfloat16)                           # (BS, 128)

    o_unn = jnp.dot(p, v_bd, preferred_element_type=jnp.float32)      # (BS, 64) head-concat
    l_bc = jnp.dot(p, ones_bd, preferred_element_type=jnp.float32)    # per-head sums,
                                                                      # broadcast over lanes
    att = (o_unn / l_bc).astype(jnp.bfloat16)                         # exact denom (review)

    proj = jnp.dot(att, w64_ref[:, W_O:W_O_END],
                   preferred_element_type=jnp.float32)                # one K=64 Wo matmul
    x2 = x + proj

    # ---- feed-forward (SwiGLU) sub-block ------------------------------------
    h2b = layer_norm(x2, g2, b2).astype(jnp.bfloat16)
    gu = jnp.dot(h2b, w64_ref[:, W_GU:W_GU_END],
                 preferred_element_type=jnp.float32)                  # (BS, 512) lane-dense
    g = gu[:, 0:D_FF]
    u = gu[:, D_FF:2 * D_FF]
    silu_g = g * pl.reciprocal(1.0 + jnp.exp(-g), approx=True)        # sigmoid via EUP
    ff = jnp.dot((silu_g * u).astype(jnp.bfloat16), wd_ref[...],
                 preferred_element_type=jnp.float32)

    # NOTE: output lane width is 64 (<128) so stores are masked; at this size an XLU
    # relayout to a lane-dense slab would cost more than the few masked vst it saves.
    o_ref[...] = x2 + ff


# ---- wrapper -----------------------------------------------------------------
def _full_spec(shape):
    n = len(shape)
    return pl.BlockSpec(shape, lambda i, _n=n: (0,) * _n)


def fused_encoder_block(x, prepared):
    """x: (B, S, D) f32.  `prepared`: kernel-ready operands from prepare_operands()."""
    B, S, D = x.shape
    bs = B * S
    ops = (x.reshape(bs, D),) + tuple(prepared)

    grid_spec = pltpu.PrefetchScalarGridSpec(
        num_scalar_prefetch=0,
        grid=(1,),                       # single invocation over the folded slab
        in_specs=[_full_spec(a.shape) for a in ops],
        out_specs=pl.BlockSpec((bs, D), lambda i: (0, 0)),
    )
    out = pl.pallas_call(
        fused_block_kernel,
        out_shape=jax.ShapeDtypeStruct((bs, D), jnp.float32),
        grid_spec=grid_spec,
        compiler_params=pltpu.CompilerParams(dimension_semantics=("arbitrary",)),
    )(*ops)
    return out.reshape(B, S, D)


def prepare_operands(params, freqs_cis, batch_size):
    """One-time offline packing of weights / tables into 3 kernel-ready operands."""
    S = freqs_cis.shape[0]
    bs = batch_size * S
    half = D_HEAD // 2

    # RoPE tables, tiled so every 16-lane head block sees [cos|cos] / [sin|sin],
    # then duplicated to cover the packed [q | k] 128-lane slab.
    cos = np.asarray(freqs_cis[..., 0], np.float32)            # (S, d_head//2)
    sin = np.asarray(freqs_cis[..., 1], np.float32)
    cos_d = np.tile(cos, (batch_size, 2 * N_HEADS))            # (bs, D)
    sin_d = np.tile(sin, (batch_size, 2 * N_HEADS))
    cs128 = np.concatenate([cos_d, cos_d], axis=1)             # (bs, 128)
    sn128 = np.concatenate([sin_d, sin_d], axis=1)

    # Block-diagonal causal additive bias over folded (B*S) rows, tiled per head block.
    idx = np.arange(bs)
    same_batch = (idx[:, None] // S) == (idx[None, :] // S)
    causal = (idx[None, :] % S) <= (idx[:, None] % S)
    bias = np.where(same_batch & causal, 0.0, -1e30).astype(np.float32)   # (bs, bs)
    bias_wide = np.tile(bias, (1, N_HEADS))                               # (bs, 128)

    # LN gamma/beta packed as the first 4 rows of a (bs, 64) block.
    lnrows = np.zeros((bs, D_MODEL), np.float32)
    lnrows[0] = np.asarray(params["g1"])
    lnrows[1] = np.asarray(params["b1"])
    lnrows[2] = np.asarray(params["g2"])
    lnrows[3] = np.asarray(params["b2"])

    tables = np.concatenate([cs128, sn128, bias_wide, lnrows], axis=1)    # (bs, 448)

    # Signed rotate-half permutation per head block (RoPE companion), folded offline.
    C = np.zeros((D_MODEL, D_MODEL), np.float32)
    for h in range(N_HEADS):
        off = h * D_HEAD
        for j in range(half):
            C[off + half + j, off + j] = -1.0     # companion of 1st half = -x2
            C[off + j, off + half + j] = 1.0      # companion of 2nd half = +x1

    scale = 1.0 / math.sqrt(D_HEAD)
    wqkv = np.asarray(params["wqkv"], np.float32)
    wq = wqkv[:, :D_MODEL] * scale                # fold softmax scale into Q proj
    wk = wqkv[:, D_MODEL:2 * D_MODEL]
    wv = wqkv[:, 2 * D_MODEL:]
    w_pack = np.concatenate([wq, wk, wq @ C, wk @ C, wv], axis=1)         # (64, 320)

    pad = np.zeros((D_MODEL, 64), np.float32)     # keeps Wgu / Wo 128-lane aligned
    wgu = np.concatenate([np.asarray(params["wg"], np.float32),
                          np.asarray(params["wu"], np.float32)], axis=1)  # (64, 512)
    w64 = np.concatenate([w_pack, pad, wgu,
                          np.asarray(params["wo"], np.float32)], axis=1)  # (64, 960)

    return (
        jnp.asarray(tables, jnp.float32),
        jnp.asarray(w64).astype(jnp.bfloat16),
        jnp.asarray(params["wd"]).astype(jnp.bfloat16),
    )


# ---- pure-JAX reference (mirrors the torch forward, full f32) -----------------
def reference_forward(x, freqs_cis, p):
    B, S, D = x.shape
    H, dh = N_HEADS, D_HEAD

    def ln(h, g, b):
        mu = h.mean(-1, keepdims=True)
        var = ((h - mu) ** 2).mean(-1, keepdims=True)
        return (h - mu) / jnp.sqrt(var + LN_EPS) * g + b

    h1 = ln(x, p["g1"], p["b1"])
    qkv = h1 @ p["wqkv"]
    q, k, v = jnp.split(qkv, 3, axis=-1)
    q = q.reshape(B, S, H, dh)
    k = k.reshape(B, S, H, dh)
    v = v.reshape(B, S, H, dh)

    d = dh // 2
    cos = freqs_cis[..., 0][None, :, None, :]
    sin = freqs_cis[..., 1][None, :, None, :]

    def rope(t):
        t1, t2 = t[..., :d], t[..., d:]
        return jnp.concatenate([t1 * cos - t2 * sin, t2 * cos + t1 * sin], -1)

    q, k = rope(q), rope(k)
    q, k, v = (t.transpose(0, 2, 1, 3) for t in (q, k, v))           # (B,H,S,dh)
    scores = jnp.einsum("bhqd,bhkd->bhqk", q, k) / math.sqrt(dh)
    mask = jnp.tril(jnp.ones((S, S), bool))
    scores = jnp.where(mask, scores, -jnp.inf)
    probs = jax.nn.softmax(scores, axis=-1)
    att = jnp.einsum("bhqk,bhkd->bhqd", probs, v)
    att = att.transpose(0, 2, 1, 3).reshape(B, S, D)
    x2 = x + att @ p["wo"]

    h2 = ln(x2, p["g2"], p["b2"])
    ff = (jax.nn.silu(h2 @ p["wg"]) * (h2 @ p["wu"])) @ p["wd"]
    return x2 + ff


# ---- driver ------------------------------------------------------------------
if __name__ == "__main__":
    key = jax.random.PRNGKey(0)
    kx, k1, k2, k3, k4, k5 = jax.random.split(key, 6)

    def linear_init(k, fan_in, fan_out):
        bound = 1.0 / math.sqrt(fan_in)
        return jax.random.uniform(k, (fan_in, fan_out), jnp.float32, -bound, bound)

    params = {
        "wqkv": linear_init(k1, D_MODEL, 3 * D_MODEL),
        "wo":   linear_init(k2, D_MODEL, D_MODEL),
        "wg":   linear_init(k3, D_MODEL, D_FF),
        "wu":   linear_init(k4, D_MODEL, D_FF),
        "wd":   linear_init(k5, D_FF, D_MODEL),
        "g1":   jnp.ones((D_MODEL,), jnp.float32),
        "b1":   jnp.zeros((D_MODEL,), jnp.float32),
        "g2":   jnp.ones((D_MODEL,), jnp.float32),
        "b2":   jnp.zeros((D_MODEL,), jnp.float32),
    }

    x = jax.random.normal(kx, (BATCH, SEQ, D_MODEL), jnp.float32)

    # freqs_cis: (S, d_head//2, 2) -> [..., 0]=cos, [..., 1]=sin
    d = D_HEAD // 2
    inv_freq = 1.0 / (10000.0 ** (jnp.arange(d, dtype=jnp.float32) / d))
    angles = jnp.arange(SEQ, dtype=jnp.float32)[:, None] * inv_freq[None, :]
    freqs_cis = jnp.stack([jnp.cos(angles), jnp.sin(angles)], axis=-1)

    prepared = prepare_operands(params, freqs_cis, BATCH)
    out = jax.block_until_ready(fused_encoder_block(x, prepared))

    ref = jax.block_until_ready(reference_forward(x, freqs_cis, params))

    assert out.shape == (BATCH, SEQ, D_MODEL)
    assert bool(jnp.all(jnp.isfinite(out)))
    assert bool(jnp.allclose(out, ref, atol=5e-2, rtol=5e-2)), float(
        jnp.max(jnp.abs(out - ref))
    )
    print("KERNEL_OK")
</pallas_src>

<mosaic_0001>
module attributes {stable_mosaic.version = 11 : i64} {
  func.func @fused_block_kernel(%arg0: i32, %arg1: memref<32x64xf32, #tpu.memory_space<vmem>>, %arg2: memref<32x448xf32, #tpu.memory_space<vmem>>, %arg3: memref<64x960xbf16, #tpu.memory_space<vmem>>, %arg4: memref<256x64xbf16, #tpu.memory_space<vmem>>, %arg5: memref<32x64xf32, #tpu.memory_space<vmem>>) attributes {dimension_semantics = [#tpu.dimension_semantics<arbitrary>], iteration_bounds = array<i64: 1>, scalar_prefetch = 0 : i64, scratch_operands = 0 : i64, tpu.core_type = #tpu.core_type<tc>, window_params = [{pipeline_mode = #tpu.pipeline_mode<synchronous>, transform_indices = @transform_0, window_bounds = array<i64: 32, 64>}, {pipeline_mode = #tpu.pipeline_mode<synchronous>, transform_indices = @transform_1, window_bounds = array<i64: 32, 448>}, {pipeline_mode = #tpu.pipeline_mode<synchronous>, transform_indices = @transform_2, window_bounds = array<i64: 64, 960>}, {pipeline_mode = #tpu.pipeline_mode<synchronous>, transform_indices = @transform_3, window_bounds = array<i64: 256, 64>}, {pipeline_mode = #tpu.pipeline_mode<synchronous>, transform_indices = @transform_4, window_bounds = array<i64: 32, 64>}]} {
    %c0 = arith.constant 0 : index
    %c0_0 = arith.constant 0 : index
    %0 = vector.load %arg1[%c0, %c0_0] : memref<32x64xf32, #tpu.memory_space<vmem>>, vector<32x64xf32>
    %c0_1 = arith.constant 0 : index
    %c0_2 = arith.constant 0 : index
    %1 = vector.load %arg2[%c0_1, %c0_2] : memref<32x448xf32, #tpu.memory_space<vmem>>, vector<32x128xf32>
    %c0_3 = arith.constant 0 : index
    %c128 = arith.constant 128 : index
    %2 = vector.load %arg2[%c0_3, %c128] : memref<32x448xf32, #tpu.memory_space<vmem>>, vector<32x128xf32>
    %c0_4 = arith.constant 0 : index
    %c256 = arith.constant 256 : index
    %3 = vector.load %arg2[%c0_4, %c256] : memref<32x448xf32, #tpu.memory_space<vmem>>, vector<32x128xf32>
    %c0_5 = arith.constant 0 : index
    %c384 = arith.constant 384 : index
    %4 = vector.load %arg2[%c0_5, %c384] : memref<32x448xf32, #tpu.memory_space<vmem>>, vector<1x64xf32>
    %c1 = arith.constant 1 : index
    %c384_6 = arith.constant 384 : index
    %5 = vector.load %arg2[%c1, %c384_6] : memref<32x448xf32, #tpu.memory_space<vmem>>, vector<1x64xf32>
    %c2 = arith.constant 2 : index
    %c384_7 = arith.constant 384 : index
    %6 = vector.load %arg2[%c2, %c384_7] : memref<32x448xf32, #tpu.memory_space<vmem>>, vector<1x64xf32>
    %c3 = arith.constant 3 : index
    %c384_8 = arith.constant 384 : index
    %7 = vector.load %arg2[%c3, %c384_8] : memref<32x448xf32, #tpu.memory_space<vmem>>, vector<1x64xf32>
    %cst = arith.constant dense<0.000000e+00> : vector<32xf32>
    %8 = vector.multi_reduction <add>, %0, %cst [1] : vector<32x64xf32> to vector<32xf32>
    %9 = vector.shape_cast %8 : vector<32xf32> to vector<32x1xf32>
    %cst_9 = arith.constant 6.400000e+01 : f32
    %10 = vector.broadcast %cst_9 : f32 to vector<32x1xf32>
    %11 = arith.divf %9, %10 : vector<32x1xf32>
    %12 = arith.mulf %0, %0 : vector<32x64xf32>
    %cst_10 = arith.constant dense<0.000000e+00> : vector<32xf32>
    %13 = vector.multi_reduction <add>, %12, %cst_10 [1] : vector<32x64xf32> to vector<32xf32>
    %14 = vector.shape_cast %13 : vector<32xf32> to vector<32x1xf32>
    %cst_11 = arith.constant 6.400000e+01 : f32
    %15 = vector.broadcast %cst_11 : f32 to vector<32x1xf32>
    %16 = arith.divf %14, %15 : vector<32x1xf32>
    %17 = arith.mulf %11, %11 : vector<32x1xf32>
    %18 = arith.subf %16, %17 : vector<32x1xf32>
    %19 = vector.broadcast %11 : vector<32x1xf32> to vector<32x64xf32>
    %20 = arith.subf %0, %19 : vector<32x64xf32>
    %cst_12 = arith.constant 9.99999974E-6 : f32
    %21 = vector.broadcast %cst_12 : f32 to vector<32x1xf32>
    %22 = arith.addf %18, %21 : vector<32x1xf32>
    %23 = math.rsqrt %22 : vector<32x1xf32>
    %24 = vector.broadcast %23 : vector<32x1xf32> to vector<32x64xf32>
    %25 = arith.mulf %20, %24 : vector<32x64xf32>
    %26 = vector.broadcast %4 : vector<1x64xf32> to vector<32x64xf32>
    %27 = arith.mulf %25, %26 : vector<32x64xf32>
    %28 = vector.broadcast %5 : vector<1x64xf32> to vector<32x64xf32>
    %29 = arith.addf %27, %28 : vector<32x64xf32>
    %30 = arith.truncf %29 : vector<32x64xf32> to vector<32x64xbf16>
    %c0_13 = arith.constant 0 : index
    %c0_14 = arith.constant 0 : index
    %31 = vector.load %arg3[%c0_13, %c0_14] : memref<64x960xbf16, #tpu.memory_space<vmem>>, vector<64x320xbf16>
    %cst_15 = arith.constant dense<0.000000e+00> : vector<32x320xf32>
    %32 = tpu.matmul %30, %31, %cst_15 {dimension_numbers = #tpu.dot_dimension_numbers<[1], [0], [0], [1], [0, 0, 1, 1], [], []>} : vector<32x64xbf16>, vector<64x320xbf16>, vector<32x320xf32> -> vector<32x320xf32>
    %33 = vector.extract_strided_slice %32 {offsets = [0, 0], sizes = [32, 128], strides = [1, 1]} : vector<32x320xf32> to vector<32x128xf32>
    %34 = arith.mulf %33, %1 : vector<32x128xf32>
    %35 = vector.extract_strided_slice %32 {offsets = [0, 128], sizes = [32, 128], strides = [1, 1]} : vector<32x320xf32> to vector<32x128xf32>
    %36 = arith.mulf %35, %2 : vector<32x128xf32>
    %37 = arith.addf %34, %36 : vector<32x128xf32>
    %38 = vector.extract_strided_slice %37 {offsets = [0, 0], sizes = [32, 64], strides = [1, 1]} : vector<32x128xf32> to vector<32x64xf32>
    %39 = arith.truncf %38 : vector<32x64xf32> to vector<32x64xbf16>
    %40 = vector.extract_strided_slice %37 {offsets = [0, 64], sizes = [32, 64], strides = [1, 1]} : vector<32x128xf32> to vector<32x64xf32>
    %41 = vector.extract_strided_slice %32 {offsets = [0, 256], sizes = [32, 64], strides = [1, 1]} : vector<32x320xf32> to vector<32x64xf32>
    %42 = tpu.iota {dimensions = array<i32: 0>} : vector<128x64xi32>
    %43 = tpu.iota {dimensions = array<i32: 1>} : vector<128x64xi32>
    %c5_i32 = arith.constant 5 : i32
    %44 = vector.broadcast %c5_i32 : i32 to vector<128x64xi32>
    %45 = arith.shrsi %42, %44 : vector<128x64xi32>
    %c4_i32 = arith.constant 4 : i32
    %46 = vector.broadcast %c4_i32 : i32 to vector<128x64xi32>
    %47 = arith.shrsi %43, %46 : vector<128x64xi32>
    %48 = arith.cmpi eq, %45, %47 : vector<128x64xi32>
    %49 = tpu.concatenate %40, %40, %40, %40 in 0 : vector<32x64xf32>, vector<32x64xf32>, vector<32x64xf32>, vector<32x64xf32> -> vector<128x64xf32>
    %50 = tpu.concatenate %41, %41, %41, %41 in 0 : vector<32x64xf32>, vector<32x64xf32>, vector<32x64xf32>, vector<32x64xf32> -> vector<128x64xf32>
    %cst_16 = arith.constant 0.000000e+00 : f32
    %51 = vector.broadcast %cst_16 : f32 to vector<128x64xf32>
    %52 = arith.select %48, %49, %51 : vector<128x64xi1>, vector<128x64xf32>
    %53 = arith.truncf %52 : vector<128x64xf32> to vector<128x64xbf16>
    %54 = arith.select %48, %50, %51 : vector<128x64xi1>, vector<128x64xf32>
    %55 = arith.truncf %54 : vector<128x64xf32> to vector<128x64xbf16>
    %cst_17 = arith.constant 1.000000e+00 : f32
    %cst_18 = arith.constant 0.000000e+00 : f32
    %56 = vector.broadcast %cst_17 : f32 to vector<128x64xf32>
    %57 = vector.broadcast %cst_18 : f32 to vector<128x64xf32>
    %58 = arith.select %48, %56, %57 : vector<128x64xi1>, vector<128x64xf32>
    %59 = arith.truncf %58 : vector<128x64xf32> to vector<128x64xbf16>
    %cst_19 = arith.constant dense<0.000000e+00> : vector<32x128xf32>
    %60 = tpu.matmul %39, %53, %cst_19 {dimension_numbers = #tpu.dot_dimension_numbers<[1], [1], [0], [0], [0, 0, 1, 0], [], []>} : vector<32x64xbf16>, vector<128x64xbf16>, vector<32x128xf32> -> vector<32x128xf32>
    %61 = arith.addf %60, %3 : vector<32x128xf32>
    %cst_20 = arith.constant dense<0xFF800000> : vector<32xf32>
    %62 = vector.multi_reduction <maximumf>, %61, %cst_20 [1] : vector<32x128xf32> to vector<32xf32>
    %63 = vector.shape_cast %62 : vector<32xf32> to vector<32x1xf32>
    %64 = vector.broadcast %63 : vector<32x1xf32> to vector<32x128xf32>
    %65 = arith.subf %61, %64 : vector<32x128xf32>
    %66 = math.exp %65 : vector<32x128xf32>
    %67 = arith.truncf %66 : vector<32x128xf32> to vector<32x128xbf16>
    %cst_21 = arith.constant dense<0.000000e+00> : vector<32x64xf32>
    %68 = tpu.matmul %67, %55, %cst_21 {dimension_numbers = #tpu.dot_dimension_numbers<[1], [0], [0], [1], [0, 0, 1, 1], [], []>} : vector<32x128xbf16>, vector<128x64xbf16>, vector<32x64xf32> -> vector<32x64xf32>
    %cst_22 = arith.constant dense<0.000000e+00> : vector<32x64xf32>
    %69 = tpu.matmul %67, %59, %cst_22 {dimension_numbers = #tpu.dot_dimension_numbers<[1], [0], [0], [1], [0, 0, 1, 1], [], []>} : vector<32x128xbf16>, vector<128x64xbf16>, vector<32x64xf32> -> vector<32x64xf32>
    %70 = arith.divf %68, %69 : vector<32x64xf32>
    %71 = arith.truncf %70 : vector<32x64xf32> to vector<32x64xbf16>
    %c0_23 = arith.constant 0 : index
    %c896 = arith.constant 896 : index
    %72 = vector.load %arg3[%c0_23, %c896] : memref<64x960xbf16, #tpu.memory_space<vmem>>, vector<64x64xbf16>
    %cst_24 = arith.constant dense<0.000000e+00> : vector<32x64xf32>
    %73 = tpu.matmul %71, %72, %cst_24 {dimension_numbers = #tpu.dot_dimension_numbers<[1], [0], [0], [1], [0, 0, 1, 1], [], []>} : vector<32x64xbf16>, vector<64x64xbf16>, vector<32x64xf32> -> vector<32x64xf32>
    %74 = arith.addf %0, %73 : vector<32x64xf32>
    %cst_25 = arith.constant dense<0.000000e+00> : vector<32xf32>
    %75 = vector.multi_reduction <add>, %74, %cst_25 [1] : vector<32x64xf32> to vector<32xf32>
    %76 = vector.shape_cast %75 : vector<32xf32> to vector<32x1xf32>
    %cst_26 = arith.constant 6.400000e+01 : f32
    %77 = vector.broadcast %cst_26 : f32 to vector<32x1xf32>
    %78 = arith.divf %76, %77 : vector<32x1xf32>
    %79 = arith.mulf %74, %74 : vector<32x64xf32>
    %cst_27 = arith.constant dense<0.000000e+00> : vector<32xf32>
    %80 = vector.multi_reduction <add>, %79, %cst_27 [1] : vector<32x64xf32> to vector<32xf32>
    %81 = vector.shape_cast %80 : vector<32xf32> to vector<32x1xf32>
    %cst_28 = arith.constant 6.400000e+01 : f32
    %82 = vector.broadcast %cst_28 : f32 to vector<32x1xf32>
    %83 = arith.divf %81, %82 : vector<32x1xf32>
    %84 = arith.mulf %78, %78 : vector<32x1xf32>
    %85 = arith.subf %83, %84 : vector<32x1xf32>
    %86 = vector.broadcast %78 : vector<32x1xf32> to vector<32x64xf32>
    %87 = arith.subf %74, %86 : vector<32x64xf32>
    %cst_29 = arith.constant 9.99999974E-6 : f32
    %88 = vector.broadcast %cst_29 : f32 to vector<32x1xf32>
    %89 = arith.addf %85, %88 : vector<32x1xf32>
    %90 = math.rsqrt %89 : vector<32x1xf32>
    %91 = vector.broadcast %90 : vector<32x1xf32> to vector<32x64xf32>
    %92 = arith.mulf %87, %91 : vector<32x64xf32>
    %93 = vector.broadcast %6 : vector<1x64xf32> to vector<32x64xf32>
    %94 = arith.mulf %92, %93 : vector<32x64xf32>
    %95 = vector.broadcast %7 : vector<1x64xf32> to vector<32x64xf32>
    %96 = arith.addf %94, %95 : vector<32x64xf32>
    %97 = arith.truncf %96 : vector<32x64xf32> to vector<32x64xbf16>
    %c0_30 = arith.constant 0 : index
    %c384_31 = arith.constant 384 : index
    %98 = vector.load %arg3[%c0_30, %c384_31] : memref<64x960xbf16, #tpu.memory_space<vmem>>, vector<64x512xbf16>
    %cst_32 = arith.constant dense<0.000000e+00> : vector<32x512xf32>
    %99 = tpu.matmul %97, %98, %cst_32 {dimension_numbers = #tpu.dot_dimension_numbers<[1], [0], [0], [1], [0, 0, 1, 1], [], []>} : vector<32x64xbf16>, vector<64x512xbf16>, vector<32x512xf32> -> vector<32x512xf32>
    %100 = vector.extract_strided_slice %99 {offsets = [0, 0], sizes = [32, 256], strides = [1, 1]} : vector<32x512xf32> to vector<32x256xf32>
    %101 = vector.extract_strided_slice %99 {offsets = [0, 256], sizes = [32, 256], strides = [1, 1]} : vector<32x512xf32> to vector<32x256xf32>
    %cst_33 = arith.constant 0.000000e+00 : f32
    %102 = vector.broadcast %cst_33 : f32 to vector<32x256xf32>
    %103 = arith.subf %102, %100 : vector<32x256xf32>
    %104 = math.exp %103 : vector<32x256xf32>
    %cst_34 = arith.constant 1.000000e+00 : f32
    %105 = vector.broadcast %cst_34 : f32 to vector<32x256xf32>
    %106 = arith.addf %105, %104 : vector<32x256xf32>
    %107 = tpu.reciprocal %106 {approx = true} : vector<32x256xf32> -> vector<32x256xf32>
    %108 = arith.mulf %100, %107 : vector<32x256xf32>
    %109 = arith.mulf %108, %101 : vector<32x256xf32>
    %110 = arith.truncf %109 : vector<32x256xf32> to vector<32x256xbf16>
    %c0_35 = arith.constant 0 : index
    %c0_36 = arith.constant 0 : index
    %111 = vector.load %arg4[%c0_35, %c0_36] : memref<256x64xbf16, #tpu.memory_space<vmem>>, vector<256x64xbf16>
    %cst_37 = arith.constant dense<0.000000e+00> : vector<32x64xf32>
    %112 = tpu.matmul %110, %111, %cst_37 {dimension_numbers = #tpu.dot_dimension_numbers<[1], [0], [0], [1], [0, 0, 1, 1], [], []>} : vector<32x256xbf16>, vector<256x64xbf16>, vector<32x64xf32> -> vector<32x64xf32>
    %113 = arith.addf %74, %112 : vector<32x64xf32>
    %c0_38 = arith.constant 0 : index
    %c0_39 = arith.constant 0 : index
    %114 = vector.load %arg5[%c0_38, %c0_39] : memref<32x64xf32, #tpu.memory_space<vmem>>, vector<32x64xf32>
    tpu.vector_store %arg5[%c0_38, %c0_39], %113 {strides = array<i32>} : memref<32x64xf32, #tpu.memory_space<vmem>>, vector<32x64xf32>,
    return
  }
  func.func @transform_0(%arg0: i32) -> (i32, i32) {
    %c0_i32 = arith.constant 0 : i32
    %c0_i32_0 = arith.constant 0 : i32
    %c0_i32_1 = arith.constant 0 : i32
    return %c0_i32, %c0_i32_0 : i32, i32
  }
  func.func @transform_1(%arg0: i32) -> (i32, i32) {
    %c0_i32 = arith.constant 0 : i32
    %c0_i32_0 = arith.constant 0 : i32
    %c0_i32_1 = arith.constant 0 : i32
    return %c0_i32, %c0_i32_0 : i32, i32
  }
  func.func @transform_2(%arg0: i32) -> (i32, i32) {
    %c0_i32 = arith.constant 0 : i32
    %c0_i32_0 = arith.constant 0 : i32
    %c0_i32_1 = arith.constant 0 : i32
    return %c0_i32, %c0_i32_0 : i32, i32
  }
  func.func @transform_3(%arg0: i32) -> (i32, i32) {
    %c0_i32 = arith.constant 0 : i32
    %c0_i32_0 = arith.constant 0 : i32
    %c0_i32_1 = arith.constant 0 : i32
    return %c0_i32, %c0_i32_0 : i32, i32
  }
  func.func @transform_4(%arg0: i32) -> (i32, i32) {
    %c0_i32 = arith.constant 0 : i32
    %c0_i32_0 = arith.constant 0 : i32
    %c0_i32_1 = arith.constant 0 : i32
    return %c0_i32, %c0_i32_0 : i32, i32
  }
}

</mosaic_0001>

<llo_original>
// kernel: tpu_custom_call.1
$region0: #{tpu_custom_call.1}
  #allocation0 [shape = 'u32[]', space=smem, size = 0x4, offset = 0x4, fixed_abs, tag = 'smem constant byte address 0x4 - core index']
  #allocation1 [shape = 'u32[144,128]{1,0:T(1,128)}', space=vmem, size = 0x12000, scoped, tag = 'internal scratch']
  %s0 = inlined_call_operand.vmem [shape: f32[32,64], index: 0, kind: input, shape index: {}]
  %s1 = inlined_call_operand.vmem [shape: f32[32,448], index: 1, kind: input, shape index: {}]
  %s2 = inlined_call_operand.hbm [shape: bf16[64,960], index: 2, kind: input, shape index: {}]
  %s3 = inlined_call_operand.vmem [shape: bf16[256,64], index: 3, kind: input, shape index: {}]
  %s4 = inlined_call_operand.hbm [shape: f32[32,64], index: 4, kind: output, shape index: {}]
  %s5 = sld [smem:[#allocation0]]
  $region30: #{tpu_custom_call.1} parent=0
    _
  %s7 = ssub.s32 1, %s5
  %s8 = scalar_select 0, %s7, %s5
  $region1: #{tpu_custom_call.1} parent=0
    #allocation2 [shape = 'u8[131072]{0}', space=vmem, size = 0x20000, scoped, tag = 'input window, operand 2, single buffered']
    #allocation3 [shape = 's32[1]{0}', space=sflag, size = 0x4, scoped, tag = 'scoped memory for tpu_custom_call.1']
    #allocation4 [shape = 's32[1]{0}', space=sflag, size = 0x4, scoped, tag = 'scoped memory for tpu_custom_call.1']
    #allocation5 [shape = 'u8[16384]{0}', space=vmem, size = 0x4000, scoped, tag = 'output window, operand 0, single buffered']
    %9 = vsyncpa [#allocation3], 0
    %10 = vsyncpa [#allocation4], 0
    // Predicated region
    $region2: #{tpu_custom_call.1} parent=1 // pred_check
      _
    $region3: #{tpu_custom_call.1} parent=1 // pred_check_branch
      %12 = sbr.rel (0) target = $region5
    $region4: #{tpu_custom_call.1} parent=1 // pred_region
      _
    $region5: #{tpu_custom_call.1} parent=1 // pred_fallthru
      _
    // Predicated region
    $region6: #{tpu_custom_call.1} parent=1 // pred_check
      _
    $region7: #{tpu_custom_call.1} parent=1 // pred_check_branch
      %14 = sbr.rel (0) target = $region9
    $region8: #{tpu_custom_call.1} parent=1 // pred_region
      _
    $region9: #{tpu_custom_call.1} parent=1 // pred_fallthru
      _
    // Predicated region
    $region10: #{tpu_custom_call.1} parent=1 // pred_check
      _
    $region11: #{tpu_custom_call.1} parent=1 // pred_check_branch
      %16 = sbr.rel (0) target = $region13
    $region12: #{tpu_custom_call.1} parent=1 // pred_region
      %s18 = ssub.s32 4096, 4096
      %19 = vsyncadd [#allocation3], %s18
      %s20 = sshll.u32 [#allocation2], 4
      %s21 = int_to_ptr.vmem [resolvable:$true] %s20
      %26 = dma.hbm_to_vmem [thread:$0]  %s2, 4096, %s21, [#allocation3], 512, 512, 32
    $region13: #{tpu_custom_call.1} parent=1 // pred_fallthru
      _
    // Predicated region
    $region14: #{tpu_custom_call.1} parent=1 // pred_check
      _
    $region15: #{tpu_custom_call.1} parent=1 // pred_check_branch
      %28 = sbr.rel (0) target = $region17
    $region16: #{tpu_custom_call.1} parent=1 // pred_region
      _
    $region17: #{tpu_custom_call.1} parent=1 // pred_fallthru
      _
    // Predicated region
    $region18: #{tpu_custom_call.1} parent=1 // pred_check
      _
    $region19: #{tpu_custom_call.1} parent=1 // pred_check_branch
      %30 = sbr.rel (0) target = $region21
    $region20: #{tpu_custom_call.1} parent=1 // pred_region
      %31 = dma.done [#allocation3], 4096
    $region21: #{tpu_custom_call.1} parent=1 // pred_fallthru
      _
    %v33 = vld [vmem:[%s0] sm:$0xff]
    %v34 = vld [vmem:[%s0 + $0x8] sm:$0xff]
    %v35 = vld [vmem:[%s0 + $0x10] sm:$0xff]
    %v36 = vld [vmem:[%s0 + $0x18] sm:$0xff]
    %v37 = vld [vmem:[%s1] sm:$0xff]
    %v38 = vld [vmem:[%s1 + $0x20] sm:$0xff]
    %v39 = vld [vmem:[%s1 + $0x40] sm:$0xff]
    %v40 = vld [vmem:[%s1 + $0x60] sm:$0xff]
    %v41 = vld [vmem:[%s1 + $0x8] sm:$0xff]
    %v42 = vld [vmem:[%s1 + $0x28] sm:$0xff]
    %v43 = vld [vmem:[%s1 + $0x48] sm:$0xff]
    %v44 = vld [vmem:[%s1 + $0x68] sm:$0xff]
    %v45 = vld [vmem:[%s1 + $0x10] sm:$0xff]
    %v46 = vld [vmem:[%s1 + $0x30] sm:$0xff]
    %v47 = vld [vmem:[%s1 + $0x50] sm:$0xff]
    %v48 = vld [vmem:[%s1 + $0x70] sm:$0xff]
    %v49 = vld [vmem:[%s1 + $0x18] ss:$0 sm:$0xff]
    %v50 = vld [vmem:[%s1 + $0x19] ss:$0 sm:$0xff]
    %v51 = vld [vmem:[%s1 + $0x1a] ss:$0 sm:$0xff]
    %v52 = vld [vmem:[%s1 + $0x1b] ss:$0 sm:$0xff]
    %vm53 = vcmask 523264
    %v54 = vsel %vm53, %v33, 0.0
    %55 = vadd.xlane.f32.xlu0 %v54
    %v56 = vpop.xlane.xlu0 %55
    %v57 = vsel %vm53, %v34, 0.0
    %58 = vadd.xlane.f32.xlu0 %v57
    %v59 = vpop.xlane.xlu0 %58
    %v60 = vsel %vm53, %v35, 0.0
    %61 = vadd.xlane.f32.xlu0 %v60
    %v62 = vpop.xlane.xlu0 %61
    %v63 = vsel %vm53, %v36, 0.0
    %64 = vadd.xlane.f32.xlu0 %v63
    %v65 = vpop.xlane.xlu0 %64
    %v66 = vrcp.pop 64.0
    %v67 = vmul.f32 %v56, %v66
    %v68 = vmul.f32 %v59, %v66
    %v69 = vmul.f32 %v62, %v66
    %v70 = vmul.f32 %v65, %v66
    %v71 = vmul.f32 %v33, %v33
    %v72 = vmul.f32 %v34, %v34
    %v73 = vmul.f32 %v35, %v35
    %v74 = vmul.f32 %v36, %v36
    %v75 = vsel %vm53, %v71, 0.0
    %76 = vadd.xlane.f32.xlu0 %v75
    %v77 = vpop.xlane.xlu0 %76
    %v78 = vsel %vm53, %v72, 0.0
    %79 = vadd.xlane.f32.xlu0 %v78
    %v80 = vpop.xlane.xlu0 %79
    %v81 = vsel %vm53, %v73, 0.0
    %82 = vadd.xlane.f32.xlu0 %v81
    %v83 = vpop.xlane.xlu0 %82
    %v84 = vsel %vm53, %v74, 0.0
    %85 = vadd.xlane.f32.xlu0 %v84
    %v86 = vpop.xlane.xlu0 %85
    %v87 = vmul.f32 %v77, %v66
    %v88 = vmul.f32 %v80, %v66
    %v89 = vmul.f32 %v83, %v66
    %v90 = vmul.f32 %v86, %v66
    %v91 = vmul.f32 %v67, %v67
    %v92 = vmul.f32 %v68, %v68
    %v93 = vmul.f32 %v69, %v69
    %v94 = vmul.f32 %v70, %v70
    %v95 = vsub.f32 %v87, %v91
    %v96 = vsub.f32 %v88, %v92
    %v97 = vsub.f32 %v89, %v93
    %v98 = vsub.f32 %v90, %v94
    %v99 = vsub.f32 %v33, %v67
    %v100 = vsub.f32 %v34, %v68
    %v101 = vsub.f32 %v35, %v69
    %v102 = vsub.f32 %v36, %v70
    %v103 = vadd.f32 %v95, 1e-05
    %v104 = vadd.f32 %v96, 1e-05
    %v105 = vadd.f32 %v97, 1e-05
    %v106 = vadd.f32 %v98, 1e-05
    %v107 = vrsqrt.pop %v103
    %v108 = vrsqrt.pop %v104
    %v109 = vrsqrt.pop %v105
    %v110 = vrsqrt.pop %v106
    %v111 = vmul.f32 %v99, %v107
    %v112 = vmul.f32 %v100, %v108
    %v113 = vmul.f32 %v101, %v109
    %v114 = vmul.f32 %v102, %v110
    %v115 = vmul.f32 %v111, %v49
    %v116 = vmul.f32 %v112, %v49
    %v117 = vmul.f32 %v113, %v49
    %v118 = vmul.f32 %v114, %v49
    %v119 = vadd.f32 %v115, %v50
    %v120 = vadd.f32 %v116, %v50
    %v121 = vadd.f32 %v117, %v50
    %v122 = vadd.f32 %v118, %v50
    %v123 = vpack.c.bf16 %v120, %v119
    %v124 = vpack.c.bf16 %v122, %v121
    %v125 = vld [vmem:[#allocation2] sm:$0xff]
    %v126 = vld [vmem:[#allocation2 + $0x8] sm:$0xf]
    %v127 = vld [vmem:[#allocation2 + $0x20] sm:$0xff]
    %v128 = vld [vmem:[#allocation2 + $0x28] sm:$0xf]
    %v129 = vld [vmem:[#allocation2 + $0x40] sm:$0xff]
    %v130 = vld [vmem:[#allocation2 + $0x48] sm:$0xf]
    %v131 = vld [vmem:[#allocation2 + $0x60] sm:$0xff]
    %v132 = vld [vmem:[#allocation2 + $0x68] sm:$0xf]
    %v133 = vld [vmem:[#allocation2 + $0x80] sm:$0xff]
    %v134 = vld [vmem:[#allocation2 + $0x88] sm:$0xf]
    %v135 = vld [vmem:[#allocation2 + $0xa0] sm:$0xff]
    %v136 = vld [vmem:[#allocation2 + $0xa8] sm:$0xf]
    %v137 = vld [vmem:[#allocation2 + $0xc0] sm:$0xff]
    %v138 = vld [vmem:[#allocation2 + $0xc8] sm:$0xf]
    %v139 = vld [vmem:[#allocation2 + $0xe0] sm:$0xff]
    %v140 = vld [vmem:[#allocation2 + $0xe8] sm:$0xf]
    %v157 = vunpack.c.l.b16 %v125
    %v158 = vunpack.c.h.b16 %v125
    %v159 = vunpack.c.l.b16 %v126
    %v160 = vunpack.c.l.b16 %v127
    %v161 = vunpack.c.h.b16 %v127
    %v162 = vunpack.c.l.b16 %v128
    %v163 = vunpack.c.l.b16 %v129
    %v164 = vunpack.c.h.b16 %v129
    %v165 = vunpack.c.l.b16 %v130
    %v166 = vunpack.c.l.b16 %v131
    %v167 = vunpack.c.h.b16 %v131
    %v168 = vunpack.c.l.b16 %v132
    %v169 = vunpack.c.l.b16 %v133
    %v170 = vunpack.c.h.b16 %v133
    %v171 = vunpack.c.l.b16 %v134
    %v172 = vunpack.c.l.b16 %v135
    %v173 = vunpack.c.h.b16 %v135
    %v174 = vunpack.c.l.b16 %v136
    %v175 = vunpack.c.l.b16 %v137
    %v176 = vunpack.c.h.b16 %v137
    %v177 = vunpack.c.l.b16 %v138
    %v178 = vunpack.c.l.b16 %v139
    %v179 = vunpack.c.h.b16 %v139
    %v180 = vunpack.c.l.b16 %v140
    %v181 = vpack.c.b16 %v160, %v157
    %v182 = vpack.c.b16 %v161, %v158
    %v183 = vpack.c.b16 %v162, %v159
    %v184 = vpack.c.b16 %v166, %v163
    %v185 = vpack.c.b16 %v167, %v164
    %v186 = vpack.c.b16 %v168, %v165
    %v187 = vpack.c.b16 %v172, %v169
    %v188 = vpack.c.b16 %v173, %v170
    %v189 = vpack.c.b16 %v174, %v171
    %v190 = vpack.c.b16 %v178, %v175
    %v191 = vpack.c.b16 %v179, %v176
    %v192 = vpack.c.b16 %v180, %v177
    %v206 = vsel %vm53, %v123, 0
    %v209 = vsel %vm53, %v124, 0
    %211 = vmatprep.subr.bf16.mxu0 %v182
    %212 = vmatpush1.bf16.msra.mxu0 %v181
    %213 = vmatprep.subr.bf16.mxu0 %v185
    %214 = vmatpush1.bf16.msra.mxu0 %v184
    %215 = vmatprep.subr.bf16.mxu0 %v188
    %216 = vmatpush1.bf16.msra.mxu0 %v187
    %217 = vmatprep.subr.bf16.mxu0 %v191
    %218 = vmatpush1.bf16.msra.mxu0 %v190
    %219 = vmatprep.subr.bf16.mxu0 0
    %220 = vmatpush1.bf16.msra.mxu0 0
    %221 = vmatprep.subr.bf16.mxu0 0
    %222 = vmatpush1.bf16.msra.mxu0 0
    %223 = vmatprep.subr.bf16.mxu0 0
    %224 = vmatpush1.bf16.msra.mxu0 0
    %225 = vmatprep.subr.bf16.mxu0 0
    %226 = vmatpush1.bf16.msra.mxu0 0
    %227 = vmatprep.subr.bf16.mxu0 0
    %228 = vmatpush1.bf16.msra.mxu0 0
    %229 = vmatprep.subr.bf16.mxu0 0
    %230 = vmatpush1.bf16.msra.mxu0 0
    %231 = vmatprep.subr.bf16.mxu0 0
    %232 = vmatpush1.bf16.msra.mxu0 0
    %233 = vmatprep.subr.bf16.mxu0 0
    %234 = vmatpush1.bf16.msra.mxu0 0
    %235 = vmatprep.subr.bf16.mxu0 0
    %236 = vmatpush1.bf16.msra.mxu0 0
    %237 = vmatprep.subr.bf16.mxu0 0
    %238 = vmatpush1.bf16.msra.mxu0 0
    %239 = vmatprep.subr.bf16.mxu0 0
    %240 = vmatpush1.bf16.msra.mxu0 0
    %241 = vmatprep.subr.bf16.mxu0 0
    %242 = vmatpush1.bf16.msra.mxu0 0
    %243 = vmatprep.mubr.bf16.mxu0 0
    %244 = vmatmul.mubr.bf16.gmra.mrb[0].mxu0 %v206
    %v245 = vpop.f32.mrb[0].mxu0
    %v246 = vadd.f32 0.0, %v245
    %v247 = vpop.f32.mrb[0].mxu0
    %v248 = vadd.f32 0.0, %v247
    %v249 = vpop.f32.mrb[0].mxu0
    %v250 = vadd.f32 0.0, %v249
    %v251 = vpop.f32.mrb[0].mxu0
    %v252 = vadd.f32 0.0, %v251
    %253 = vmatprep.mubr.bf16.mxu0 0
    %254 = vmatmul.mubr.bf16.gmra.mrb[0].mxu0 %v209
    %v255 = vpop.f32.mrb[0].mxu0
    %v256 = vadd.f32 0.0, %v255
    %v257 = vpop.f32.mrb[0].mxu0
    %v258 = vadd.f32 0.0, %v257
    %v259 = vpop.f32.mrb[0].mxu0
    %v260 = vadd.f32 0.0, %v259
    %v261 = vpop.f32.mrb[0].mxu0
    %v262 = vadd.f32 0.0, %v261
    %263 = vdwg.mxu0
    %264 = vmatprep.subr.bf16.mxu0 0
    %265 = vmatpush1.bf16.msra.mxu0 %v183
    %266 = vmatprep.subr.bf16.mxu0 0
    %267 = vmatpush1.bf16.msra.mxu0 %v186
    %268 = vmatprep.subr.bf16.mxu0 0
    %269 = vmatpush1.bf16.msra.mxu0 %v189
    %270 = vmatprep.subr.bf16.mxu0 0
    %271 = vmatpush1.bf16.msra.mxu0 %v192
    %272 = vmatprep.subr.bf16.mxu0 0
    %273 = vmatpush1.bf16.msra.mxu0 0
    %274 = vmatprep.subr.bf16.mxu0 0
    %275 = vmatpush1.bf16.msra.mxu0 0
    %276 = vmatprep.subr.bf16.mxu0 0
    %277 = vmatpush1.bf16.msra.mxu0 0
    %278 = vmatprep.subr.bf16.mxu0 0
    %279 = vmatpush1.bf16.msra.mxu0 0
    %280 = vmatprep.subr.bf16.mxu0 0
    %281 = vmatpush1.bf16.msra.mxu0 0
    %282 = vmatprep.subr.bf16.mxu0 0
    %283 = vmatpush1.bf16.msra.mxu0 0
    %284 = vmatprep.subr.bf16.mxu0 0
    %285 = vmatpush1.bf16.msra.mxu0 0
    %286 = vmatprep.subr.bf16.mxu0 0
    %287 = vmatpush1.bf16.msra.mxu0 0
    %288 = vmatprep.subr.bf16.mxu0 0
    %289 = vmatpush1.bf16.msra.mxu0 0
    %290 = vmatprep.subr.bf16.mxu0 0
    %291 = vmatpush1.bf16.msra.mxu0 0
    %292 = vmatprep.subr.bf16.mxu0 0
    %293 = vmatpush1.bf16.msra.mxu0 0
    %294 = vmatprep.subr.bf16.mxu0 0
    %295 = vmatpush1.bf16.msra.mxu0 0
    %296 = vmatprep.mubr.bf16.mxu0 0
    %297 = vmatmul.mubr.bf16.gmra.mrb[0].mxu0 %v206
    %v298 = vpop.f32.mrb[0].mxu0
    %v299 = vadd.f32 0.0, %v298
    %v300 = vpop.f32.mrb[0].mxu0
    %v301 = vpop.f32.mrb[0].mxu0
    %v302 = vadd.f32 0.0, %v301
    %v303 = vpop.f32.mrb[0].mxu0
    %304 = vmatprep.mubr.bf16.mxu0 0
    %305 = vmatmul.mubr.bf16.gmra.mrb[0].mxu0 %v209
    %v306 = vpop.f32.mrb[0].mxu0
    %v307 = vadd.f32 0.0, %v306
    %v308 = vpop.f32.mrb[0].mxu0
    %v309 = vpop.f32.mrb[0].mxu0
    %v310 = vadd.f32 0.0, %v309
    %v311 = vpop.f32.mrb[0].mxu0
    %312 = vdwg.mxu0
    %v313 = vmul.f32 %v246, %v37
    %v314 = vmul.f32 %v250, %v38
    %v315 = vmul.f32 %v256, %v39
    %v316 = vmul.f32 %v260, %v40
    %v317 = vmul.f32 %v248, %v41
    %v318 = vmul.f32 %v252, %v42
    %v319 = vmul.f32 %v258, %v43
    %v320 = vmul.f32 %v262, %v44
    %v321 = vadd.f32 %v313, %v317
    %v322 = vadd.f32 %v314, %v318
    %v323 = vadd.f32 %v315, %v319
    %v324 = vadd.f32 %v316, %v320
    %v325 = vpack.c.bf16 %v322, %v321
    %v326 = vpack.c.bf16 %v324, %v323
    %v327 = vlaneseq
    %v328 = vshrl.u32 %v327, 7
    %v329 = vadd.s32 %v328, 8
    %v330 = vadd.s32 %v328, 16
    %v331 = vadd.s32 %v328, 24
    %v332 = vadd.s32 %v328, 32
    %v333 = vadd.s32 %v328, 40
    %v334 = vadd.s32 %v328, 48
    %v335 = vadd.s32 %v328, 56
    %v336 = vadd.s32 %v328, 64
    %v337 = vadd.s32 %v328, 72
    %v338 = vadd.s32 %v328, 80
    %v339 = vadd.s32 %v328, 88
    %v340 = vadd.s32 %v328, 96
    %v341 = vadd.s32 %v328, 104
    %v342 = vadd.s32 %v328, 112
    %v343 = vadd.s32 %v328, 120
    %v344 = vlaneseq
    %v345 = vand.u32 %v344, 127
    %v346 = vshra.s32 %v328, 5
    %v347 = vshra.s32 %v329, 5
    %v348 = vshra.s32 %v330, 5
    %v349 = vshra.s32 %v331, 5
    %v350 = vshra.s32 %v332, 5
    %v351 = vshra.s32 %v333, 5
    %v352 = vshra.s32 %v334, 5
    %v353 = vshra.s32 %v335, 5
    %v354 = vshra.s32 %v336, 5
    %v355 = vshra.s32 %v337, 5
    %v356 = vshra.s32 %v338, 5
    %v357 = vshra.s32 %v339, 5
    %v358 = vshra.s32 %v340, 5
    %v359 = vshra.s32 %v341, 5
    %v360 = vshra.s32 %v342, 5
    %v361 = vshra.s32 %v343, 5
    %v362 = vshra.s32 %v345, 4
    %vm363 = vcmp.eq.s32.totalorder %v346, %v362
    %vm364 = vcmp.eq.s32.totalorder %v347, %v362
    %vm365 = vcmp.eq.s32.totalorder %v348, %v362
    %vm366 = vcmp.eq.s32.totalorder %v349, %v362
    %vm367 = vcmp.eq.s32.totalorder %v350, %v362
    %vm368 = vcmp.eq.s32.totalorder %v351, %v362
    %vm369 = vcmp.eq.s32.totalorder %v352, %v362
    %vm370 = vcmp.eq.s32.totalorder %v353, %v362
    %vm371 = vcmp.eq.s32.totalorder %v354, %v362
    %vm372 = vcmp.eq.s32.totalorder %v355, %v362
    %vm373 = vcmp.eq.s32.totalorder %v356, %v362
    %vm374 = vcmp.eq.s32.totalorder %v357, %v362
    %vm375 = vcmp.eq.s32.totalorder %v358, %v362
    %vm376 = vcmp.eq.s32.totalorder %v359, %v362
    %vm377 = vcmp.eq.s32.totalorder %v360, %v362
    %vm378 = vcmp.eq.s32.totalorder %v361, %v362
    %383 = vrot.lane.b32.xlu0 %v321, 64
    %v384 = vpop.permute.xlu0 %383
    %385 = vrot.lane.b32.xlu0 %v322, 64
    %v386 = vpop.permute.xlu0 %385
    %387 = vrot.lane.b32.xlu0 %v323, 64
    %v388 = vpop.permute.xlu0 %387
    %389 = vrot.lane.b32.xlu0 %v324, 64
    %v390 = vpop.permute.xlu0 %389
    %v395 = vsel %vm363, %v384, 0.0
    %v396 = vsel %vm364, %v386, 0.0
    %v397 = vsel %vm365, %v388, 0.0
    %v398 = vsel %vm366, %v390, 0.0
    %v399 = vsel %vm367, %v384, 0.0
    %v400 = vsel %vm368, %v386, 0.0
    %v401 = vsel %vm369, %v388, 0.0
    %v402 = vsel %vm370, %v390, 0.0
    %v403 = vsel %vm371, %v384, 0.0
    %v404 = vsel %vm372, %v386, 0.0
    %v405 = vsel %vm373, %v388, 0.0
    %v406 = vsel %vm374, %v390, 0.0
    %v407 = vsel %vm375, %v384, 0.0
    %v408 = vsel %vm376, %v386, 0.0
    %v409 = vsel %vm377, %v388, 0.0
    %v410 = vsel %vm378, %v390, 0.0
    %v411 = vpack.c.bf16 %v396, %v395
    %v412 = vpack.c.bf16 %v398, %v397
    %v413 = vpack.c.bf16 %v400, %v399
    %v414 = vpack.c.bf16 %v402, %v401
    %v415 = vpack.c.bf16 %v404, %v403
    %v416 = vpack.c.bf16 %v406, %v405
    %v417 = vpack.c.bf16 %v408, %v407
    %v418 = vpack.c.bf16 %v410, %v409
    %v419 = vsel %vm363, %v299, 0.0
    %v420 = vsel %vm364, %v302, 0.0
    %v421 = vsel %vm365, %v307, 0.0
    %v422 = vsel %vm366, %v310, 0.0
    %v423 = vsel %vm367, %v299, 0.0
    %v424 = vsel %vm368, %v302, 0.0
    %v425 = vsel %vm369, %v307, 0.0
    %v426 = vsel %vm370, %v310, 0.0
    %v427 = vsel %vm371, %v299, 0.0
    %v428 = vsel %vm372, %v302, 0.0
    %v429 = vsel %vm373, %v307, 0.0
    %v430 = vsel %vm374, %v310, 0.0
    %v431 = vsel %vm375, %v299, 0.0
    %v432 = vsel %vm376, %v302, 0.0
    %v433 = vsel %vm377, %v307, 0.0
    %v434 = vsel %vm378, %v310, 0.0
    %v435 = vpack.c.bf16 %v420, %v419
    %v436 = vpack.c.bf16 %v422, %v421
    %v437 = vpack.c.bf16 %v424, %v423
    %v438 = vpack.c.bf16 %v426, %v425
    %v439 = vpack.c.bf16 %v428, %v427
    %v440 = vpack.c.bf16 %v430, %v429
    %v441 = vpack.c.bf16 %v432, %v431
    %v442 = vpack.c.bf16 %v434, %v433
    %v443 = vsel %vm363, 1.0, 0.0
    %v444 = vsel %vm364, 1.0, 0.0
    %v445 = vsel %vm365, 1.0, 0.0
    %v446 = vsel %vm366, 1.0, 0.0
    %v447 = vsel %vm367, 1.0, 0.0
    %v448 = vsel %vm368, 1.0, 0.0
    %v449 = vsel %vm369, 1.0, 0.0
    %v450 = vsel %vm370, 1.0, 0.0
    %v451 = vsel %vm371, 1.0, 0.0
    %v452 = vsel %vm372, 1.0, 0.0
    %v453 = vsel %vm373, 1.0, 0.0
    %v454 = vsel %vm374, 1.0, 0.0
    %v455 = vsel %vm375, 1.0, 0.0
    %v456 = vsel %vm376, 1.0, 0.0
    %v457 = vsel %vm377, 1.0, 0.0
    %v458 = vsel %vm378, 1.0, 0.0
    %v459 = vpack.c.bf16 %v444, %v443
    %v460 = vpack.c.bf16 %v446, %v445
    %v461 = vpack.c.bf16 %v448, %v447
    %v462 = vpack.c.bf16 %v450, %v449
    %v463 = vpack.c.bf16 %v452, %v451
    %v464 = vpack.c.bf16 %v454, %v453
    %v465 = vpack.c.bf16 %v456, %v455
    %v466 = vpack.c.bf16 %v458, %v457
    %v468 = vsel %vm53, %v325, 0
    %v471 = vsel %vm53, %v326, 0
    %v474 = vsel %vm53, %v411, 0
    %v477 = vsel %vm53, %v412, 0
    %v480 = vsel %vm53, %v413, 0
    %v483 = vsel %vm53, %v414, 0
    %v486 = vsel %vm53, %v415, 0
    %v489 = vsel %vm53, %v416, 0
    %v492 = vsel %vm53, %v417, 0
    %v495 = vsel %vm53, %v418, 0
    %497 = vmatprep.subr.bf16.mxu0 0
    %498 = vmatpush1.bf16.xpose.msra.mxu0 %v474
    %499 = vmatprep.subr.bf16.mxu0 0
    %500 = vmatpush1.bf16.xpose.msra.mxu0 %v477
    %501 = vmatprep.subr.bf16.mxu0 0
    %502 = vmatpush1.bf16.xpose.msra.mxu0 %v480
    %503 = vmatprep.subr.bf16.mxu0 0
    %504 = vmatpush1.bf16.xpose.msra.mxu0 %v483
    %505 = vmatprep.subr.bf16.mxu0 0
    %506 = vmatpush1.bf16.xpose.msra.mxu0 %v486
    %507 = vmatprep.subr.bf16.mxu0 0
    %508 = vmatpush1.bf16.xpose.msra.mxu0 %v489
    %509 = vmatprep.subr.bf16.mxu0 0
    %510 = vmatpush1.bf16.xpose.msra.mxu0 %v492
    %511 = vmatprep.subr.bf16.mxu0 0
    %512 = vmatpush1.bf16.xpose.msra.mxu0 %v495
    %513 = vmatprep.subr.bf16.mxu0 0
    %514 = vmatpush1.bf16.xpose.msra.mxu0 0
    %515 = vmatprep.subr.bf16.mxu0 0
    %516 = vmatpush1.bf16.xpose.msra.mxu0 0
    %517 = vmatprep.subr.bf16.mxu0 0
    %518 = vmatpush1.bf16.xpose.msra.mxu0 0
    %519 = vmatprep.subr.bf16.mxu0 0
    %520 = vmatpush1.bf16.xpose.msra.mxu0 0
    %521 = vmatprep.subr.bf16.mxu0 0
    %522 = vmatpush1.bf16.xpose.msra.mxu0 0
    %523 = vmatprep.subr.bf16.mxu0 0
    %524 = vmatpush1.bf16.xpose.msra.mxu0 0
    %525 = vmatprep.subr.bf16.mxu0 0
    %526 = vmatpush1.bf16.xpose.msra.mxu0 0
    %527 = vmatprep.subr.bf16.mxu0 0
    %528 = vmatpush1.bf16.xpose.msra.mxu0 0
    %529 = vmatprep.mubr.bf16.mxu0 0
    %530 = vmatmul.mubr.bf16.gmra.mrb[0].mxu0 %v468
    %v531 = vpop.f32.mrb[0].mxu0
    %v532 = vadd.f32 %v45, %v531
    %v533 = vpop.f32.mrb[0].mxu0
    %v534 = vpop.f32.mrb[0].mxu0
    %v535 = vadd.f32 %v46, %v534
    %v536 = vpop.f32.mrb[0].mxu0
    %537 = vmatprep.mubr.bf16.mxu0 0
    %538 = vmatmul.mubr.bf16.gmra.mrb[0].mxu0 %v471
    %v539 = vpop.f32.mrb[0].mxu0
    %v540 = vadd.f32 %v47, %v539
    %v541 = vpop.f32.mrb[0].mxu0
    %v542 = vpop.f32.mrb[0].mxu0
    %v543 = vadd.f32 %v48, %v542
    %v544 = vpop.f32.mrb[0].mxu0
    %545 = vdwg.mxu0
    %546 = vmax.xlane.f32.xlu0 %v532
    %v547 = vpop.xlane.xlu0 %546
    %548 = vmax.xlane.f32.xlu0 %v535
    %v549 = vpop.xlane.xlu0 %548
    %550 = vmax.xlane.f32.xlu0 %v540
    %v551 = vpop.xlane.xlu0 %550
    %552 = vmax.xlane.f32.xlu0 %v543
    %v553 = vpop.xlane.xlu0 %552
    %v554 = vsub.f32 %v532, %v547
    %v555 = vsub.f32 %v535, %v549
    %v556 = vsub.f32 %v540, %v551
    %v557 = vsub.f32 %v543, %v553
    %v558 = vmul.f32 %v554, 1.442695
    %v559 = vpow.pop %v558
    %v560 = vmul.f32 %v555, 1.442695
    %v561 = vpow.pop %v560
    %v562 = vmul.f32 %v556, 1.442695
    %v563 = vpow.pop %v562
    %v564 = vmul.f32 %v557, 1.442695
    %v565 = vpow.pop %v564
    %v566 = vpack.c.bf16 %v561, %v559
    %v567 = vpack.c.bf16 %v565, %v563
    %568 = vmatprep.subr.bf16.mxu0 0
    %569 = vmatpush1.bf16.msra.mxu0 %v435
    %570 = vmatprep.subr.bf16.mxu0 0
    %571 = vmatpush1.bf16.msra.mxu0 %v436
    %572 = vmatprep.subr.bf16.mxu0 0
    %573 = vmatpush1.bf16.msra.mxu0 %v437
    %574 = vmatprep.subr.bf16.mxu0 0
    %575 = vmatpush1.bf16.msra.mxu0 %v438
    %576 = vmatprep.subr.bf16.mxu0 0
    %577 = vmatpush1.bf16.msra.mxu0 %v439
    %578 = vmatprep.subr.bf16.mxu0 0
    %579 = vmatpush1.bf16.msra.mxu0 %v440
    %580 = vmatprep.subr.bf16.mxu0 0
    %581 = vmatpush1.bf16.msra.mxu0 %v441
    %582 = vmatprep.subr.bf16.mxu0 0
    %583 = vmatpush1.bf16.msra.mxu0 %v442
    %584 = vmatprep.subr.bf16.mxu0 0
    %585 = vmatpush1.bf16.msra.mxu0 0
    %586 = vmatprep.subr.bf16.mxu0 0
    %587 = vmatpush1.bf16.msra.mxu0 0
    %588 = vmatprep.subr.bf16.mxu0 0
    %589 = vmatpush1.bf16.msra.mxu0 0
    %590 = vmatprep.subr.bf16.mxu0 0
    %591 = vmatpush1.bf16.msra.mxu0 0
    %592 = vmatprep.subr.bf16.mxu0 0
    %593 = vmatpush1.bf16.msra.mxu0 0
    %594 = vmatprep.subr.bf16.mxu0 0
    %595 = vmatpush1.bf16.msra.mxu0 0
    %596 = vmatprep.subr.bf16.mxu0 0
    %597 = vmatpush1.bf16.msra.mxu0 0
    %598 = vmatprep.subr.bf16.mxu0 0
    %599 = vmatpush1.bf16.msra.mxu0 0
    %600 = vmatprep.mubr.bf16.mxu0 0
    %601 = vmatmul.mubr.bf16.gmra.mrb[0].mxu0 %v566
    %v602 = vpop.f32.mrb[0].mxu0
    %v603 = vadd.f32 0.0, %v602
    %v604 = vpop.f32.mrb[0].mxu0
    %v605 = vpop.f32.mrb[0].mxu0
    %v606 = vadd.f32 0.0, %v605
    %v607 = vpop.f32.mrb[0].mxu0
    %608 = vmatprep.mubr.bf16.mxu0 0
    %609 = vmatmul.mubr.bf16.gmra.mrb[0].mxu0 %v567
    %v610 = vpop.f32.mrb[0].mxu0
    %v611 = vadd.f32 0.0, %v610
    %v612 = vpop.f32.mrb[0].mxu0
    %v613 = vpop.f32.mrb[0].mxu0
    %v614 = vadd.f32 0.0, %v613
    %v615 = vpop.f32.mrb[0].mxu0
    %616 = vdwg.mxu0
    %617 = vmatprep.subr.bf16.mxu0 0
    %618 = vmatpush1.bf16.msra.mxu0 %v459
    %619 = vmatprep.subr.bf16.mxu0 0
    %620 = vmatpush1.bf16.msra.mxu0 %v460
    %621 = vmatprep.subr.bf16.mxu0 0
    %622 = vmatpush1.bf16.msra.mxu0 %v461
    %623 = vmatprep.subr.bf16.mxu0 0
    %624 = vmatpush1.bf16.msra.mxu0 %v462
    %625 = vmatprep.subr.bf16.mxu0 0
    %626 = vmatpush1.bf16.msra.mxu0 %v463
    %627 = vmatprep.subr.bf16.mxu0 0
    %628 = vmatpush1.bf16.msra.mxu0 %v464
    %629 = vmatprep.subr.bf16.mxu0 0
    %630 = vmatpush1.bf16.msra.mxu0 %v465
    %631 = vmatprep.subr.bf16.mxu0 0
    %632 = vmatpush1.bf16.msra.mxu0 %v466
    %633 = vmatprep.subr.bf16.mxu0 0
    %634 = vmatpush1.bf16.msra.mxu0 0
    %635 = vmatprep.subr.bf16.mxu0 0
    %636 = vmatpush1.bf16.msra.mxu0 0
    %637 = vmatprep.subr.bf16.mxu0 0
    %638 = vmatpush1.bf16.msra.mxu0 0
    %639 = vmatprep.subr.bf16.mxu0 0
    %640 = vmatpush1.bf16.msra.mxu0 0
    %641 = vmatprep.subr.bf16.mxu0 0
    %642 = vmatpush1.bf16.msra.mxu0 0
    %643 = vmatprep.subr.bf16.mxu0 0
    %644 = vmatpush1.bf16.msra.mxu0 0
    %645 = vmatprep.subr.bf16.mxu0 0
    %646 = vmatpush1.bf16.msra.mxu0 0
    %647 = vmatprep.subr.bf16.mxu0 0
    %648 = vmatpush1.bf16.msra.mxu0 0
    %649 = vmatprep.mubr.bf16.mxu0 0
    %650 = vmatmul.mubr.bf16.gmra.mrb[0].mxu0 %v566
    %v651 = vpop.f32.mrb[0].mxu0
    %v652 = vadd.f32 0.0, %v651
    %v653 = vpop.f32.mrb[0].mxu0
    %v654 = vpop.f32.mrb[0].mxu0
    %v655 = vadd.f32 0.0, %v654
    %v656 = vpop.f32.mrb[0].mxu0
    %657 = vmatprep.mubr.bf16.mxu0 0
    %658 = vmatmul.mubr.bf16.gmra.mrb[0].mxu0 %v567
    %v659 = vpop.f32.mrb[0].mxu0
    %v660 = vadd.f32 0.0, %v659
    %v661 = vpop.f32.mrb[0].mxu0
    %v662 = vpop.f32.mrb[0].mxu0
    %v663 = vadd.f32 0.0, %v662
    %v664 = vpop.f32.mrb[0].mxu0
    %665 = vdwg.mxu0
    %v666 = vrcp.pop %v652
    %v667 = vmul.f32 %v603, %v666
    %v668 = vrcp.pop %v655
    %v669 = vmul.f32 %v606, %v668
    %v670 = vrcp.pop %v660
    %v671 = vmul.f32 %v611, %v670
    %v672 = vrcp.pop %v663
    %v673 = vmul.f32 %v614, %v672
    %v674 = vpack.c.bf16 %v669, %v667
    %v675 = vpack.c.bf16 %v673, %v671
    %v676 = vld [vmem:[#allocation2 + $0x1c] sm:$0xf]
    %v677 = vld [vmem:[#allocation2 + $0x3c] sm:$0xf]
    %v678 = vld [vmem:[#allocation2 + $0x5c] sm:$0xf]
    %v679 = vld [vmem:[#allocation2 + $0x7c] sm:$0xf]
    %v680 = vld [vmem:[#allocation2 + $0x9c] sm:$0xf]
    %v681 = vld [vmem:[#allocation2 + $0xbc] sm:$0xf]
    %v682 = vld [vmem:[#allocation2 + $0xdc] sm:$0xf]
    %v683 = vld [vmem:[#allocation2 + $0xfc] sm:$0xf]
    %v692 = vunpack.c.l.b16 %v676
    %v693 = vunpack.c.l.b16 %v677
    %v694 = vunpack.c.l.b16 %v678
    %v695 = vunpack.c.l.b16 %v679
    %v696 = vunpack.c.l.b16 %v680
    %v697 = vunpack.c.l.b16 %v681
    %v698 = vunpack.c.l.b16 %v682
    %v699 = vunpack.c.l.b16 %v683
    %v700 = vpack.c.b16 %v693, %v692
    %v701 = vpack.c.b16 %v695, %v694
    %v702 = vpack.c.b16 %v697, %v696
    %v703 = vpack.c.b16 %v699, %v698
    %v709 = vsel %vm53, %v674, 0
    %v712 = vsel %vm53, %v675, 0
    %714 = vmatprep.subr.bf16.mxu0 0
    %715 = vmatpush1.bf16.msra.mxu0 %v700
    %716 = vmatprep.subr.bf16.mxu0 0
    %717 = vmatpush1.bf16.msra.mxu0 %v701
    %718 = vmatprep.subr.bf16.mxu0 0
    %719 = vmatpush1.bf16.msra.mxu0 %v702
    %720 = vmatprep.subr.bf16.mxu0 0
    %721 = vmatpush1.bf16.msra.mxu0 %v703
    %722 = vmatprep.subr.bf16.mxu0 0
    %723 = vmatpush1.bf16.msra.mxu0 0
    %724 = vmatprep.subr.bf16.mxu0 0
    %725 = vmatpush1.bf16.msra.mxu0 0
    %726 = vmatprep.subr.bf16.mxu0 0
    %727 = vmatpush1.bf16.msra.mxu0 0
    %728 = vmatprep.subr.bf16.mxu0 0
    %729 = vmatpush1.bf16.msra.mxu0 0
    %730 = vmatprep.subr.bf16.mxu0 0
    %731 = vmatpush1.bf16.msra.mxu0 0
    %732 = vmatprep.subr.bf16.mxu0 0
    %733 = vmatpush1.bf16.msra.mxu0 0
    %734 = vmatprep.subr.bf16.mxu0 0
    %735 = vmatpush1.bf16.msra.mxu0 0
    %736 = vmatprep.subr.bf16.mxu0 0
    %737 = vmatpush1.bf16.msra.mxu0 0
    %738 = vmatprep.subr.bf16.mxu0 0
    %739 = vmatpush1.bf16.msra.mxu0 0
    %740 = vmatprep.subr.bf16.mxu0 0
    %741 = vmatpush1.bf16.msra.mxu0 0
    %742 = vmatprep.subr.bf16.mxu0 0
    %743 = vmatpush1.bf16.msra.mxu0 0
    %744 = vmatprep.subr.bf16.mxu0 0
    %745 = vmatpush1.bf16.msra.mxu0 0
    %746 = vmatprep.mubr.bf16.mxu0 0
    %747 = vmatmul.mubr.bf16.gmra.mrb[0].mxu0 %v709
    %v748 = vpop.f32.mrb[0].mxu0
    %v749 = vadd.f32 0.0, %v748
    %v750 = vpop.f32.mrb[0].mxu0
    %v751 = vpop.f32.mrb[0].mxu0
    %v752 = vadd.f32 0.0, %v751
    %v753 = vpop.f32.mrb[0].mxu0
    %754 = vmatprep.mubr.bf16.mxu0 0
    %755 = vmatmul.mubr.bf16.gmra.mrb[0].mxu0 %v712
    %v756 = vpop.f32.mrb[0].mxu0
    %v757 = vadd.f32 0.0, %v756
    %v758 = vpop.f32.mrb[0].mxu0
    %v759 = vpop.f32.mrb[0].mxu0
    %v760 = vadd.f32 0.0, %v759
    %v761 = vpop.f32.mrb[0].mxu0
    %762 = vdwg.mxu0
    %v763 = vadd.f32 %v33, %v749
    %v764 = vadd.f32 %v34, %v752
    %v765 = vadd.f32 %v35, %v757
    %v766 = vadd.f32 %v36, %v760
    %v767 = vsel %vm53, %v763, 0.0
    %768 = vadd.xlane.f32.xlu0 %v767
    %v769 = vpop.xlane.xlu0 %768
    %v770 = vsel %vm53, %v764, 0.0
    %771 = vadd.xlane.f32.xlu0 %v770
    %v772 = vpop.xlane.xlu0 %771
    %v773 = vsel %vm53, %v765, 0.0
    %774 = vadd.xlane.f32.xlu0 %v773
    %v775 = vpop.xlane.xlu0 %774
    %v776 = vsel %vm53, %v766, 0.0
    %777 = vadd.xlane.f32.xlu0 %v776
    %v778 = vpop.xlane.xlu0 %777
    %v779 = vmul.f32 %v769, %v66
    %v780 = vmul.f32 %v772, %v66
    %v781 = vmul.f32 %v775, %v66
    %v782 = vmul.f32 %v778, %v66
    %v783 = vmul.f32 %v763, %v763
    %v784 = vmul.f32 %v764, %v764
    %v785 = vmul.f32 %v765, %v765
    %v786 = vmul.f32 %v766, %v766
    %v787 = vsel %vm53, %v783, 0.0
    %788 = vadd.xlane.f32.xlu0 %v787
    %v789 = vpop.xlane.xlu0 %788
    %v790 = vsel %vm53, %v784, 0.0
    %791 = vadd.xlane.f32.xlu0 %v790
    %v792 = vpop.xlane.xlu0 %791
    %v793 = vsel %vm53, %v785, 0.0
    %794 = vadd.xlane.f32.xlu0 %v793
    %v795 = vpop.xlane.xlu0 %794
    %v796 = vsel %vm53, %v786, 0.0
    %797 = vadd.xlane.f32.xlu0 %v796
    %v798 = vpop.xlane.xlu0 %797
    %v799 = vmul.f32 %v789, %v66
    %v800 = vmul.f32 %v792, %v66
    %v801 = vmul.f32 %v795, %v66
    %v802 = vmul.f32 %v798, %v66
    %v803 = vmul.f32 %v779, %v779
    %v804 = vmul.f32 %v780, %v780
    %v805 = vmul.f32 %v781, %v781
    %v806 = vmul.f32 %v782, %v782
    %v807 = vsub.f32 %v799, %v803
    %v808 = vsub.f32 %v800, %v804
    %v809 = vsub.f32 %v801, %v805
    %v810 = vsub.f32 %v802, %v806
    %v811 = vsub.f32 %v763, %v779
    %v812 = vsub.f32 %v764, %v780
    %v813 = vsub.f32 %v765, %v781
    %v814 = vsub.f32 %v766, %v782
    %v815 = vadd.f32 %v807, 1e-05
    %v816 = vadd.f32 %v808, 1e-05
    %v817 = vadd.f32 %v809, 1e-05
    %v818 = vadd.f32 %v810, 1e-05
    %v819 = vrsqrt.pop %v815
    %v820 = vrsqrt.pop %v816
    %v821 = vrsqrt.pop %v817
    %v822 = vrsqrt.pop %v818
    %v823 = vmul.f32 %v811, %v819
    %v824 = vmul.f32 %v812, %v820
    %v825 = vmul.f32 %v813, %v821
    %v826 = vmul.f32 %v814, %v822
    %v827 = vmul.f32 %v823, %v51
    %v828 = vmul.f32 %v824, %v51
    %v829 = vmul.f32 %v825, %v51
    %v830 = vmul.f32 %v826, %v51
    %v831 = vadd.f32 %v827, %v52
    %v832 = vadd.f32 %v828, %v52
    %v833 = vadd.f32 %v829, %v52
    %v834 = vadd.f32 %v830, %v52
    %v835 = vpack.c.bf16 %v832, %v831
    %v836 = vpack.c.bf16 %v834, %v833
    %v837 = vld [vmem:[#allocation2 + $0xc] sm:$0xff]
    %v838 = vld [vmem:[#allocation2 + $0x14] sm:$0xff]
    %v839 = vld [vmem:[#allocation2 + $0x2c] sm:$0xff]
    %v840 = vld [vmem:[#allocation2 + $0x34] sm:$0xff]
    %v841 = vld [vmem:[#allocation2 + $0x4c] sm:$0xff]
    %v842 = vld [vmem:[#allocation2 + $0x54] sm:$0xff]
    %v843 = vld [vmem:[#allocation2 + $0x6c] sm:$0xff]
    %v844 = vld [vmem:[#allocation2 + $0x74] sm:$0xff]
    %v845 = vld [vmem:[#allocation2 + $0x8c] sm:$0xff]
    %v846 = vld [vmem:[#allocation2 + $0x94] sm:$0xff]
    %v847 = vld [vmem:[#allocation2 + $0xac] sm:$0xff]
    %v848 = vld [vmem:[#allocation2 + $0xb4] sm:$0xff]
    %v849 = vld [vmem:[#allocation2 + $0xcc] sm:$0xff]
    %v850 = vld [vmem:[#allocation2 + $0xd4] sm:$0xff]
    %v851 = vld [vmem:[#allocation2 + $0xec] sm:$0xff]
    %v852 = vld [vmem:[#allocation2 + $0xf4] sm:$0xff]
    %v869 = vunpack.c.l.b16 %v837
    %v870 = vunpack.c.h.b16 %v837
    %v871 = vunpack.c.l.b16 %v838
    %v872 = vunpack.c.h.b16 %v838
    %v873 = vunpack.c.l.b16 %v839
    %v874 = vunpack.c.h.b16 %v839
    %v875 = vunpack.c.l.b16 %v840
    %v876 = vunpack.c.h.b16 %v840
    %v877 = vunpack.c.l.b16 %v841
    %v878 = vunpack.c.h.b16 %v841
    %v879 = vunpack.c.l.b16 %v842
    %v880 = vunpack.c.h.b16 %v842
    %v881 = vunpack.c.l.b16 %v843
    %v882 = vunpack.c.h.b16 %v843
    %v883 = vunpack.c.l.b16 %v844
    %v884 = vunpack.c.h.b16 %v844
    %v885 = vunpack.c.l.b16 %v845
    %v886 = vunpack.c.h.b16 %v845
    %v887 = vunpack.c.l.b16 %v846
    %v888 = vunpack.c.h.b16 %v846
    %v889 = vunpack.c.l.b16 %v847
    %v890 = vunpack.c.h.b16 %v847
    %v891 = vunpack.c.l.b16 %v848
    %v892 = vunpack.c.h.b16 %v848
    %v893 = vunpack.c.l.b16 %v849
    %v894 = vunpack.c.h.b16 %v849
    %v895 = vunpack.c.l.b16 %v850
    %v896 = vunpack.c.h.b16 %v850
    %v897 = vunpack.c.l.b16 %v851
    %v898 = vunpack.c.h.b16 %v851
    %v899 = vunpack.c.l.b16 %v852
    %v900 = vunpack.c.h.b16 %v852
    %v901 = vpack.c.b16 %v873, %v869
    %v902 = vpack.c.b16 %v874, %v870
    %v903 = vpack.c.b16 %v875, %v871
    %v904 = vpack.c.b16 %v876, %v872
    %v905 = vpack.c.b16 %v881, %v877
    %v906 = vpack.c.b16 %v882, %v878
    %v907 = vpack.c.b16 %v883, %v879
    %v908 = vpack.c.b16 %v884, %v880
    %v909 = vpack.c.b16 %v889, %v885
    %v910 = vpack.c.b16 %v890, %v886
    %v911 = vpack.c.b16 %v891, %v887
    %v912 = vpack.c.b16 %v892, %v888
    %v913 = vpack.c.b16 %v897, %v893
    %v914 = vpack.c.b16 %v898, %v894
    %v915 = vpack.c.b16 %v899, %v895
    %v916 = vpack.c.b16 %v900, %v896
    %v934 = vsel %vm53, %v835, 0
    %v937 = vsel %vm53, %v836, 0
    %939 = vmatprep.subr.bf16.mxu0 %v902
    %940 = vmatpush1.bf16.msra.mxu0 %v901
    %941 = vmatprep.subr.bf16.mxu0 %v906
    %942 = vmatpush1.bf16.msra.mxu0 %v905
    %943 = vmatprep.subr.bf16.mxu0 %v910
    %944 = vmatpush1.bf16.msra.mxu0 %v909
    %945 = vmatprep.subr.bf16.mxu0 %v914
    %946 = vmatpush1.bf16.msra.mxu0 %v913
    %947 = vmatprep.subr.bf16.mxu0 0
    %948 = vmatpush1.bf16.msra.mxu0 0
    %949 = vmatprep.subr.bf16.mxu0 0
    %950 = vmatpush1.bf16.msra.mxu0 0
    %951 = vmatprep.subr.bf16.mxu0 0
    %952 = vmatpush1.bf16.msra.mxu0 0
    %953 = vmatprep.subr.bf16.mxu0 0
    %954 = vmatpush1.bf16.msra.mxu0 0
    %955 = vmatprep.subr.bf16.mxu0 0
    %956 = vmatpush1.bf16.msra.mxu0 0
    %957 = vmatprep.subr.bf16.mxu0 0
    %958 = vmatpush1.bf16.msra.mxu0 0
    %959 = vmatprep.subr.bf16.mxu0 0
    %960 = vmatpush1.bf16.msra.mxu0 0
    %961 = vmatprep.subr.bf16.mxu0 0
    %962 = vmatpush1.bf16.msra.mxu0 0
    %963 = vmatprep.subr.bf16.mxu0 0
    %964 = vmatpush1.bf16.msra.mxu0 0
    %965 = vmatprep.subr.bf16.mxu0 0
    %966 = vmatpush1.bf16.msra.mxu0 0
    %967 = vmatprep.subr.bf16.mxu0 0
    %968 = vmatpush1.bf16.msra.mxu0 0
    %969 = vmatprep.subr.bf16.mxu0 0
    %970 = vmatpush1.bf16.msra.mxu0 0
    %971 = vmatprep.mubr.bf16.mxu0 0
    %972 = vmatmul.mubr.bf16.gmra.mrb[0].mxu0 %v934
    %v973 = vpop.f32.mrb[0].mxu0
    %v974 = vadd.f32 0.0, %v973
    %v975 = vpop.f32.mrb[0].mxu0
    %v976 = vadd.f32 0.0, %v975
    %v977 = vpop.f32.mrb[0].mxu0
    %v978 = vadd.f32 0.0, %v977
    %v979 = vpop.f32.mrb[0].mxu0
    %v980 = vadd.f32 0.0, %v979
    %981 = vmatprep.mubr.bf16.mxu0 0
    %982 = vmatmul.mubr.bf16.gmra.mrb[0].mxu0 %v937
    %v983 = vpop.f32.mrb[0].mxu0
    %v984 = vadd.f32 0.0, %v983
    %v985 = vpop.f32.mrb[0].mxu0
    %v986 = vadd.f32 0.0, %v985
    %v987 = vpop.f32.mrb[0].mxu0
    %v988 = vadd.f32 0.0, %v987
    %v989 = vpop.f32.mrb[0].mxu0
    %v990 = vadd.f32 0.0, %v989
    %991 = vdwg.mxu0
    %992 = vmatprep.subr.bf16.mxu0 %v904
    %993 = vmatpush1.bf16.msra.mxu0 %v903
    %994 = vmatprep.subr.bf16.mxu0 %v908
    %995 = vmatpush1.bf16.msra.mxu0 %v907
    %996 = vmatprep.subr.bf16.mxu0 %v912
    %997 = vmatpush1.bf16.msra.mxu0 %v911
    %998 = vmatprep.subr.bf16.mxu0 %v916
    %999 = vmatpush1.bf16.msra.mxu0 %v915
    %1000 = vmatprep.subr.bf16.mxu0 0
    %1001 = vmatpush1.bf16.msra.mxu0 0
    %1002 = vmatprep.subr.bf16.mxu0 0
    %1003 = vmatpush1.bf16.msra.mxu0 0
    %1004 = vmatprep.subr.bf16.mxu0 0
    %1005 = vmatpush1.bf16.msra.mxu0 0
    %1006 = vmatprep.subr.bf16.mxu0 0
    %1007 = vmatpush1.bf16.msra.mxu0 0
    %1008 = vmatprep.subr.bf16.mxu0 0
    %1009 = vmatpush1.bf16.msra.mxu0 0
    %1010 = vmatprep.subr.bf16.mxu0 0
    %1011 = vmatpush1.bf16.msra.mxu0 0
    %1012 = vmatprep.subr.bf16.mxu0 0
    %1013 = vmatpush1.bf16.msra.mxu0 0
    %1014 = vmatprep.subr.bf16.mxu0 0
    %1015 = vmatpush1.bf16.msra.mxu0 0
    %1016 = vmatprep.subr.bf16.mxu0 0
    %1017 = vmatpush1.bf16.msra.mxu0 0
    %1018 = vmatprep.subr.bf16.mxu0 0
    %1019 = vmatpush1.bf16.msra.mxu0 0
    %1020 = vmatprep.subr.bf16.mxu0 0
    %1021 = vmatpush1.bf16.msra.mxu0 0
    %1022 = vmatprep.subr.bf16.mxu0 0
    %1023 = vmatpush1.bf16.msra.mxu0 0
    %1024 = vmatprep.mubr.bf16.mxu0 0
    %1025 = vmatmul.mubr.bf16.gmra.mrb[0].mxu0 %v934
    %v1026 = vpop.f32.mrb[0].mxu0
    %v1027 = vadd.f32 0.0, %v1026
    %v1028 = vpop.f32.mrb[0].mxu0
    %v1029 = vadd.f32 0.0, %v1028
    %v1030 = vpop.f32.mrb[0].mxu0
    %v1031 = vadd.f32 0.0, %v1030
    %v1032 = vpop.f32.mrb[0].mxu0
    %v1033 = vadd.f32 0.0, %v1032
    %1034 = vmatprep.mubr.bf16.mxu0 0
    %1035 = vmatmul.mubr.bf16.gmra.mrb[0].mxu0 %v937
    %v1036 = vpop.f32.mrb[0].mxu0
    %v1037 = vadd.f32 0.0, %v1036
    %v1038 = vpop.f32.mrb[0].mxu0
    %v1039 = vadd.f32 0.0, %v1038
    %v1040 = vpop.f32.mrb[0].mxu0
    %v1041 = vadd.f32 0.0, %v1040
    %v1042 = vpop.f32.mrb[0].mxu0
    %v1043 = vadd.f32 0.0, %v1042
    %1044 = vdwg.mxu0
    %v1045 = vsub.f32 0.0, %v974
    %v1046 = vsub.f32 0.0, %v976
    %v1047 = vsub.f32 0.0, %v978
    %v1048 = vsub.f32 0.0, %v980
    %v1049 = vsub.f32 0.0, %v984
    %v1050 = vsub.f32 0.0, %v986
    %v1051 = vsub.f32 0.0, %v988
    %v1052 = vsub.f32 0.0, %v990
    %v1053 = vmul.f32 %v1045, 1.442695
    %v1054 = vpow.pop %v1053
    %v1055 = vmul.f32 %v1046, 1.442695
    %v1056 = vpow.pop %v1055
    %v1057 = vmul.f32 %v1047, 1.442695
    %v1058 = vpow.pop %v1057
    %v1059 = vmul.f32 %v1048, 1.442695
    %v1060 = vpow.pop %v1059
    %v1061 = vmul.f32 %v1049, 1.442695
    %v1062 = vpow.pop %v1061
    %v1063 = vmul.f32 %v1050, 1.442695
    %v1064 = vpow.pop %v1063
    %v1065 = vmul.f32 %v1051, 1.442695
    %v1066 = vpow.pop %v1065
    %v1067 = vmul.f32 %v1052, 1.442695
    %v1068 = vpow.pop %v1067
    %v1069 = vadd.f32 %v1054, 1.0
    %v1070 = vadd.f32 %v1056, 1.0
    %v1071 = vadd.f32 %v1058, 1.0
    %v1072 = vadd.f32 %v1060, 1.0
    %v1073 = vadd.f32 %v1062, 1.0
    %v1074 = vadd.f32 %v1064, 1.0
    %v1075 = vadd.f32 %v1066, 1.0
    %v1076 = vadd.f32 %v1068, 1.0
    %v1077 = vrcp.pop %v1069
    %v1078 = vrcp.pop %v1070
    %v1079 = vrcp.pop %v1071
    %v1080 = vrcp.pop %v1072
    %v1081 = vrcp.pop %v1073
    %v1082 = vrcp.pop %v1074
    %v1083 = vrcp.pop %v1075
    %v1084 = vrcp.pop %v1076
    %v1085 = vmul.f32 %v974, %v1077
    %v1086 = vmul.f32 %v976, %v1078
    %v1087 = vmul.f32 %v978, %v1079
    %v1088 = vmul.f32 %v980, %v1080
    %v1089 = vmul.f32 %v984, %v1081
    %v1090 = vmul.f32 %v986, %v1082
    %v1091 = vmul.f32 %v988, %v1083
    %v1092 = vmul.f32 %v990, %v1084
    %v1093 = vmul.f32 %v1085, %v1027
    %v1094 = vmul.f32 %v1086, %v1029
    %v1095 = vmul.f32 %v1087, %v1031
    %v1096 = vmul.f32 %v1088, %v1033
    %v1097 = vmul.f32 %v1089, %v1037
    %v1098 = vmul.f32 %v1090, %v1039
    %v1099 = vmul.f32 %v1091, %v1041
    %v1100 = vmul.f32 %v1092, %v1043
    %v1101 = vpack.c.bf16 %v1095, %v1093
    %v1102 = vpack.c.bf16 %v1096, %v1094
    %v1103 = vpack.c.bf16 %v1099, %v1097
    %v1104 = vpack.c.bf16 %v1100, %v1098
    %v1105 = vld [vmem:[%s3] sm:$0xf]
    %v1106 = vld [vmem:[%s3 + $0x4] sm:$0xf]
    %v1107 = vld [vmem:[%s3 + $0x8] sm:$0xf]
    %v1108 = vld [vmem:[%s3 + $0xc] sm:$0xf]
    %v1109 = vld [vmem:[%s3 + $0x10] sm:$0xf]
    %v1110 = vld [vmem:[%s3 + $0x14] sm:$0xf]
    %v1111 = vld [vmem:[%s3 + $0x18] sm:$0xf]
    %v1112 = vld [vmem:[%s3 + $0x1c] sm:$0xf]
    %v1113 = vld [vmem:[%s3 + $0x20] sm:$0xf]
    %v1114 = vld [vmem:[%s3 + $0x24] sm:$0xf]
    %v1115 = vld [vmem:[%s3 + $0x28] sm:$0xf]
    %v1116 = vld [vmem:[%s3 + $0x2c] sm:$0xf]
    %v1117 = vld [vmem:[%s3 + $0x30] sm:$0xf]
    %v1118 = vld [vmem:[%s3 + $0x34] sm:$0xf]
    %v1119 = vld [vmem:[%s3 + $0x38] sm:$0xf]
    %v1120 = vld [vmem:[%s3 + $0x3c] sm:$0xf]
    %v1121 = vld [vmem:[%s3 + $0x40] sm:$0xf]
    %v1122 = vld [vmem:[%s3 + $0x44] sm:$0xf]
    %v1123 = vld [vmem:[%s3 + $0x48] sm:$0xf]
    %v1124 = vld [vmem:[%s3 + $0x4c] sm:$0xf]
    %v1125 = vld [vmem:[%s3 + $0x50] sm:$0xf]
    %v1126 = vld [vmem:[%s3 + $0x54] sm:$0xf]
    %v1127 = vld [vmem:[%s3 + $0x58] sm:$0xf]
    %v1128 = vld [vmem:[%s3 + $0x5c] sm:$0xf]
    %v1129 = vld [vmem:[%s3 + $0x60] sm:$0xf]
    %v1130 = vld [vmem:[%s3 + $0x64] sm:$0xf]
    %v1131 = vld [vmem:[%s3 + $0x68] sm:$0xf]
    %v1132 = vld [vmem:[%s3 + $0x6c] sm:$0xf]
    %v1133 = vld [vmem:[%s3 + $0x70] sm:$0xf]
    %v1134 = vld [vmem:[%s3 + $0x74] sm:$0xf]
    %v1135 = vld [vmem:[%s3 + $0x78] sm:$0xf]
    %v1136 = vld [vmem:[%s3 + $0x7c] sm:$0xf]
    %v1169 = vunpack.c.l.b16 %v1105
    %v1170 = vunpack.c.l.b16 %v1106
    %v1171 = vunpack.c.l.b16 %v1107
    %v1172 = vunpack.c.l.b16 %v1108
    %v1173 = vunpack.c.l.b16 %v1109
    %v1174 = vunpack.c.l.b16 %v1110
    %v1175 = vunpack.c.l.b16 %v1111
    %v1176 = vunpack.c.l.b16 %v1112
    %v1177 = vunpack.c.l.b16 %v1113
    %v1178 = vunpack.c.l.b16 %v1114
    %v1179 = vunpack.c.l.b16 %v1115
    %v1180 = vunpack.c.l.b16 %v1116
    %v1181 = vunpack.c.l.b16 %v1117
    %v1182 = vunpack.c.l.b16 %v1118
    %v1183 = vunpack.c.l.b16 %v1119
    %v1184 = vunpack.c.l.b16 %v1120
    %v1185 = vunpack.c.l.b16 %v1121
    %v1186 = vunpack.c.l.b16 %v1122
    %v1187 = vunpack.c.l.b16 %v1123
    %v1188 = vunpack.c.l.b16 %v1124
    %v1189 = vunpack.c.l.b16 %v1125
    %v1190 = vunpack.c.l.b16 %v1126
    %v1191 = vunpack.c.l.b16 %v1127
    %v1192 = vunpack.c.l.b16 %v1128
    %v1193 = vunpack.c.l.b16 %v1129
    %v1194 = vunpack.c.l.b16 %v1130
    %v1195 = vunpack.c.l.b16 %v1131
    %v1196 = vunpack.c.l.b16 %v1132
    %v1197 = vunpack.c.l.b16 %v1133
    %v1198 = vunpack.c.l.b16 %v1134
    %v1199 = vunpack.c.l.b16 %v1135
    %v1200 = vunpack.c.l.b16 %v1136
    %v1201 = vpack.c.b16 %v1170, %v1169
    %v1202 = vpack.c.b16 %v1172, %v1171
    %v1203 = vpack.c.b16 %v1174, %v1173
    %v1204 = vpack.c.b16 %v1176, %v1175
    %v1205 = vpack.c.b16 %v1178, %v1177
    %v1206 = vpack.c.b16 %v1180, %v1179
    %v1207 = vpack.c.b16 %v1182, %v1181
    %v1208 = vpack.c.b16 %v1184, %v1183
    %v1209 = vpack.c.b16 %v1186, %v1185
    %v1210 = vpack.c.b16 %v1188, %v1187
    %v1211 = vpack.c.b16 %v1190, %v1189
    %v1212 = vpack.c.b16 %v1192, %v1191
    %v1213 = vpack.c.b16 %v1194, %v1193
    %v1214 = vpack.c.b16 %v1196, %v1195
    %v1215 = vpack.c.b16 %v1198, %v1197
    %v1216 = vpack.c.b16 %v1200, %v1199
    %1233 = vmatprep.subr.bf16.mxu0 0
    %1234 = vmatpush1.bf16.msra.mxu0 %v1201
    %1235 = vmatprep.subr.bf16.mxu0 0
    %1236 = vmatpush1.bf16.msra.mxu0 %v1202
    %1237 = vmatprep.subr.bf16.mxu0 0
    %1238 = vmatpush1.bf16.msra.mxu0 %v1203
    %1239 = vmatprep.subr.bf16.mxu0 0
    %1240 = vmatpush1.bf16.msra.mxu0 %v1204
    %1241 = vmatprep.subr.bf16.mxu0 0
    %1242 = vmatpush1.bf16.msra.mxu0 %v1205
    %1243 = vmatprep.subr.bf16.mxu0 0
    %1244 = vmatpush1.bf16.msra.mxu0 %v1206
    %1245 = vmatprep.subr.bf16.mxu0 0
    %1246 = vmatpush1.bf16.msra.mxu0 %v1207
    %1247 = vmatprep.subr.bf16.mxu0 0
    %1248 = vmatpush1.bf16.msra.mxu0 %v1208
    %1249 = vmatprep.subr.bf16.mxu0 0
    %1250 = vmatpush1.bf16.msra.mxu0 %v1209
    %1251 = vmatprep.subr.bf16.mxu0 0
    %1252 = vmatpush1.bf16.msra.mxu0 %v1210
    %1253 = vmatprep.subr.bf16.mxu0 0
    %1254 = vmatpush1.bf16.msra.mxu0 %v1211
    %1255 = vmatprep.subr.bf16.mxu0 0
    %1256 = vmatpush1.bf16.msra.mxu0 %v1212
    %1257 = vmatprep.subr.bf16.mxu0 0
    %1258 = vmatpush1.bf16.msra.mxu0 %v1213
    %1259 = vmatprep.subr.bf16.mxu0 0
    %1260 = vmatpush1.bf16.msra.mxu0 %v1214
    %1261 = vmatprep.subr.bf16.mxu0 0
    %1262 = vmatpush1.bf16.msra.mxu0 %v1215
    %1263 = vmatprep.subr.bf16.mxu0 0
    %1264 = vmatpush1.bf16.msra.mxu0 %v1216
    %1265 = vmatprep.mubr.bf16.mxu0 %v1102
    %1266 = vmatmul.mubr.bf16.gmra.mrb[0].mxu0 %v1101
    %v1267 = vpop.f32.mrb[0].mxu0
    %v1268 = vadd.f32 0.0, %v1267
    %v1269 = vpop.f32.mrb[0].mxu0
    %v1270 = vpop.f32.mrb[0].mxu0
    %v1271 = vadd.f32 0.0, %v1270
    %v1272 = vpop.f32.mrb[0].mxu0
    %1273 = vmatprep.mubr.bf16.mxu0 %v1104
    %1274 = vmatmul.mubr.bf16.gmra.mrb[0].mxu0 %v1103
    %v1275 = vpop.f32.mrb[0].mxu0
    %v1276 = vadd.f32 0.0, %v1275
    %v1277 = vpop.f32.mrb[0].mxu0
    %v1278 = vpop.f32.mrb[0].mxu0
    %v1279 = vadd.f32 0.0, %v1278
    %v1280 = vpop.f32.mrb[0].mxu0
    %1281 = vdwg.mxu0
    %v1282 = vadd.f32 %v763, %v1268
    %v1283 = vadd.f32 %v764, %v1271
    %v1284 = vadd.f32 %v765, %v1276
    %v1285 = vadd.f32 %v766, %v1279
    %1286 = vst.msk [vmem:[#allocation5] sm:$0xff] %vm53, %v1282
    %1287 = vst.msk [vmem:[#allocation5 + $0x8] sm:$0xff] %vm53, %v1283
    %1288 = vst.msk [vmem:[#allocation5 + $0x10] sm:$0xff] %vm53, %v1284
    %1289 = vst.msk [vmem:[#allocation5 + $0x18] sm:$0xff] %vm53, %v1285
    // Predicated region
    $region22: #{tpu_custom_call.1} parent=1 // pred_check
      _
    $region23: #{tpu_custom_call.1} parent=1 // pred_check_branch
      %1291 = sbr.rel (0) target = $region25
    $region24: #{tpu_custom_call.1} parent=1 // pred_region
      %s1293 = ssub.s32 512, 512
      %1294 = vsyncadd [#allocation4], %s1293
      %s1295 = sshll.u32 [#allocation5], 4
      %s1296 = int_to_ptr.vmem [resolvable:$true] %s1295
      %1301 = dma.vmem_to_hbm [thread:$0]  %s1296, 512, %s4, [#allocation4], 128, 128, 8
    $region25: #{tpu_custom_call.1} parent=1 // pred_fallthru
      _
    // Predicated region
    $region26: #{tpu_custom_call.1} parent=1 // pred_check
      _
    $region27: #{tpu_custom_call.1} parent=1 // pred_check_branch
      %1303 = sbr.rel (0) target = $region29
    $region28: #{tpu_custom_call.1} parent=1 // pred_region
      %1304 = dma.done [#allocation4], 512
    $region29: #{tpu_custom_call.1} parent=1 // pred_fallthru
      _
    %1305 = vsyncpa [#allocation3], 1
    %1306 = vsyncpa [#allocation4], 1

</llo_original>
